<compile_context>
chip_gen: v6e
topology: v6e:2x2x1
jax: 0.10.0
libtpu: 0.0.40
codegen_flags: <defaults>
</compile_context>

<pallas_src>
import functools

import jax
import jax.numpy as jnp
import numpy as np
from jax.experimental import pallas as pl
from jax.experimental.pallas import tpu as pltpu

SCALE = 2  # integer scale_factor for mode='nearest'


def _upsample_rowpacked_kernel(x_ref, o_ref, *, scale):
    # x_ref block: (1, Cb, TH, W)  ->  o_ref block: (1, Cb, TH, scale*scale*W)
    x = x_ref[0]                                   # (Cb, TH, W)
    cb, th, w = x.shape
    # Interleave-repeat along W (lane axis): packed col w0*scale + s reads
    # col w0, i.e. out[..., j] = x[..., j // scale].  Only cross-lane op.
    xw = jnp.broadcast_to(x[..., None], (cb, th, w, scale))
    xw = xw.reshape(cb, th, w * scale)             # (Cb, TH, W*scale)
    # Duplicate each row `scale` times by packing the copies side by side on
    # the lane axis (no sublane shuffle, lane-dense store); the wrapper's
    # contiguous reshape turns them into `scale` consecutive output rows.
    o_ref[0] = jnp.concatenate([xw] * scale, axis=-1).astype(o_ref.dtype)


def _pick_block(C, H, W, itemsize, scale, block_budget_bytes):
    """Choose (Cb, TH): channels and input rows processed per grid step."""
    # in + out bytes contributed by one (cb=1, th=1) input row.
    row_bytes = (1 + scale * scale) * W * itemsize
    # Sublane-packing multiple for the second-to-last block dim.
    sub = {1: 32, 2: 16, 4: 8}.get(itemsize, 8)
    # TH candidates: full H (always legal) or divisors of H that are multiples
    # of the sublane packing factor (keeps the (8,128)-style tiling legal).
    cands = [H] + [d for d in range(sub, H, sub) if H % d == 0]
    feas = [t for t in cands if t * row_bytes <= block_budget_bytes]
    th = max(feas) if feas else min(cands)
    cb_cap = max(1, block_budget_bytes // (th * row_bytes))
    cb = max(d for d in range(1, C + 1) if C % d == 0 and d <= cb_cap)
    return cb, th


def upsample_nearest(x, scale=SCALE, *, block_budget_bytes=8 * 1024 * 1024):
    assert isinstance(scale, int) and scale >= 1
    N, C, H, W = x.shape
    if scale == 1:
        return x
    itemsize = x.dtype.itemsize
    cb, th = _pick_block(C, H, W, itemsize, scale, block_budget_bytes)
    wo_packed = scale * scale * W          # kernel-visible packed output row

    grid = (N, C // cb, H // th)
    in_spec = pl.BlockSpec((1, cb, th, W), lambda n, c, h: (n, c, h, 0))
    out_spec = pl.BlockSpec((1, cb, th, wo_packed), lambda n, c, h: (n, c, h, 0))

    # Double-buffered in+out working set (+headroom), kept conservative so it
    # is safe on v7x's 64 MiB physical VMEM while comfortably exceeding the
    # 16 MiB default scoped limit on v5e.
    block_bytes = (1 + scale * scale) * cb * th * W * itemsize
    vmem_limit = int(max(32 << 20, min(4 * block_bytes + (4 << 20), 48 << 20)))

    total_bytes = (1 + scale * scale) * N * C * H * W * itemsize

    kernel = functools.partial(_upsample_rowpacked_kernel, scale=scale)

    y_packed = pl.pallas_call(
        kernel,
        out_shape=jax.ShapeDtypeStruct((N, C, H, wo_packed), x.dtype),
        grid_spec=pltpu.PrefetchScalarGridSpec(
            num_scalar_prefetch=0,
            grid=grid,
            in_specs=[in_spec],
            out_specs=out_spec,
        ),
        compiler_params=pltpu.CompilerParams(
            dimension_semantics=("parallel", "parallel", "parallel"),
            vmem_limit_bytes=vmem_limit,
        ),
        cost_estimate=pl.CostEstimate(
            flops=0, transcendentals=0, bytes_accessed=total_bytes),
    )(x)

    # Free, contiguous reshape: (N, C, H, S*S*W) and (N, C, H*S, W*S) share the
    # exact same row-major memory layout, and the packed row copies land at
    # exactly the nearest-neighbour positions.
    return y_packed.reshape(N, C, H * scale, W * scale)


if __name__ == "__main__":
    def ref_nearest(x_np, s):
        return np.repeat(np.repeat(x_np, s, axis=2), s, axis=3)

    # 1) Module-default small shape (f32).
    key = jax.random.PRNGKey(0)
    x = jax.random.normal(key, (2, 4, 16, 16), dtype=jnp.float32)
    y = jax.block_until_ready(upsample_nearest(x, SCALE))
    ref = ref_nearest(np.asarray(x), SCALE)
    assert y.shape == ref.shape, (y.shape, ref.shape)
    assert y.dtype == x.dtype
    np.testing.assert_array_equal(np.asarray(y), ref)

    # 2) bf16 path (pure data movement, no upcast — halves HBM traffic).
    xb = x.astype(jnp.bfloat16)
    yb = jax.block_until_ready(upsample_nearest(xb, SCALE))
    assert yb.dtype == jnp.bfloat16
    np.testing.assert_array_equal(np.asarray(yb),
                                  ref_nearest(np.asarray(xb), SCALE))

    # 3) Exercise the C/H tiled path (Cb < C, TH < H) with a tiny block budget
    #    on a still-small problem, validating the multi-step grid.
    x2 = jax.random.normal(jax.random.PRNGKey(1), (2, 4, 32, 32),
                           dtype=jnp.float32)
    y2 = jax.block_until_ready(
        upsample_nearest(x2, SCALE, block_budget_bytes=8 * 1024))
    np.testing.assert_array_equal(np.asarray(y2),
                                  ref_nearest(np.asarray(x2), SCALE))

    print("KERNEL_OK")
</pallas_src>

<mosaic_0001>
module attributes {stable_mosaic.version = 11 : i64} {
  func.func @_upsample_rowpacked_kernel(%arg0: i32, %arg1: i32, %arg2: i32, %arg3: memref<1x4x16x16xf32, #tpu.memory_space<vmem>>, %arg4: memref<1x4x16x64xf32, #tpu.memory_space<vmem>>) attributes {dimension_semantics = [#tpu.dimension_semantics<parallel>, #tpu.dimension_semantics<parallel>, #tpu.dimension_semantics<parallel>], iteration_bounds = array<i64: 2, 1, 1>, scalar_prefetch = 0 : i64, scratch_operands = 0 : i64, tpu.core_type = #tpu.core_type<tc>, window_params = [{transform_indices = @transform_0, window_bounds = array<i64: 1, 4, 16, 16>}, {transform_indices = @transform_1, window_bounds = array<i64: 1, 4, 16, 64>}]} {
    %c0 = arith.constant 0 : index
    %c0_0 = arith.constant 0 : index
    %c0_1 = arith.constant 0 : index
    %c0_2 = arith.constant 0 : index
    %0 = vector.load %arg3[%c0, %c0_0, %c0_1, %c0_2] : memref<1x4x16x16xf32, #tpu.memory_space<vmem>>, vector<1x4x16x16xf32>
    %1 = vector.shape_cast %0 : vector<1x4x16x16xf32> to vector<4x16x16xf32>
    %2 = vector.shape_cast %1 : vector<4x16x16xf32> to vector<4x16x16x1xf32>
    %3 = vector.shape_cast %2 : vector<4x16x16x1xf32> to vector<4x16x16x1xf32>
    %4 = vector.broadcast %3 : vector<4x16x16x1xf32> to vector<4x16x16x2xf32>
    %5 = vector.shape_cast %4 : vector<4x16x16x2xf32> to vector<4x16x32xf32>
    %6 = tpu.concatenate %5, %5 in 2 : vector<4x16x32xf32>, vector<4x16x32xf32> -> vector<4x16x64xf32>
    %c0_3 = arith.constant 0 : index
    %c0_4 = arith.constant 0 : index
    %c0_5 = arith.constant 0 : index
    %c0_6 = arith.constant 0 : index
    %7 = vector.load %arg4[%c0_3, %c0_4, %c0_5, %c0_6] : memref<1x4x16x64xf32, #tpu.memory_space<vmem>>, vector<1x4x16x64xf32>
    %8 = vector.shape_cast %7 : vector<1x4x16x64xf32> to vector<4x16x64xf32>
    %9 = vector.shape_cast %6 : vector<4x16x64xf32> to vector<1x4x16x64xf32>
    tpu.vector_store %arg4[%c0_3, %c0_4, %c0_5, %c0_6], %9 {strides = array<i32>} : memref<1x4x16x64xf32, #tpu.memory_space<vmem>>, vector<1x4x16x64xf32>,
    return
  }
  func.func @transform_0(%arg0: i32, %arg1: i32, %arg2: i32) -> (i32, i32, i32, i32) {
    %c0_i32 = arith.constant 0 : i32
    %c0_i32_0 = arith.constant 0 : i32
    return %arg0, %arg1, %arg2, %c0_i32 : i32, i32, i32, i32
  }
  func.func @transform_1(%arg0: i32, %arg1: i32, %arg2: i32) -> (i32, i32, i32, i32) {
    %c0_i32 = arith.constant 0 : i32
    %c0_i32_0 = arith.constant 0 : i32
    return %arg0, %arg1, %arg2, %c0_i32 : i32, i32, i32, i32
  }
}

</mosaic_0001>

<llo_original>
// kernel: tpu_custom_call.1
$region0: #{tpu_custom_call.1}
  #allocation0 [shape = 'u32[]', space=smem, size = 0x4, offset = 0x4, fixed_abs, tag = 'smem constant byte address 0x4 - core index']
  #allocation1 [shape = 'u32[144,128]{1,0:T(1,128)}', space=vmem, size = 0x12000, scoped, tag = 'internal scratch']
  %s0 = inlined_call_operand.hbm [shape: f32[2,4,16,16], index: 0, kind: input, shape index: {}]
  %s1 = inlined_call_operand.hbm [shape: f32[2,4,16,64], index: 1, kind: output, shape index: {}]
  %s2 = sld [smem:[#allocation0]]
  $region41: #{tpu_custom_call.1} parent=0
    _
  %s4 = ssub.s32 1, %s2
  %s5 = scalar_select 0, %s4, %s2
  $region1: #{tpu_custom_call.1} parent=0
    #allocation2 [shape = 'u8[65536]{0}', space=vmem, size = 0x10000, scoped, tag = 'input window, operand 0']
    #allocation3 [shape = 's32[2]{0}', space=sflag, size = 0x8, scoped, tag = 'scoped memory for tpu_custom_call.1']
    #allocation4 [shape = 's32[2]{0}', space=sflag, size = 0x8, scoped, tag = 'scoped memory for tpu_custom_call.1']
    #allocation5 [shape = 'u8[65536]{0}', space=vmem, size = 0x10000, scoped, tag = 'output window, operand 0']
    %6 = vsyncpa [#allocation3], 0
    %s7 = scalar_lea.sflag [#allocation3], 1
    %8 = vsyncpa %s7, 0
    %9 = vsyncpa [#allocation4], 0
    %s10 = scalar_lea.sflag [#allocation4], 1
    %11 = vsyncpa %s10, 0
    loop: start=0, step=1, limit=4
    $region2: #{tpu_custom_call.1} parent=1 // loop_pre_header
      _
    $region3: #{tpu_custom_call.1} parent=1 // loop_header
      %s13 = sphi 0, %s17
      %p14 = scmp.ge.s32.totalorder %s13, 4
      %s20 = sphi 0, %s39
      %s21 = sphi 0, %s35
      %s22 = sphi 0, %s31
      %s23 = sphi 0, %s20
      %s24 = sphi 0, %s21
      %s25 = sphi 0, %s22
      %s26 = sphi 0, %s23
      %s27 = sphi 0, %s24
      %s28 = sphi 0, %s25
      %s46 = sphi 0, %s48
      %s49 = sphi 0, %s46
      %s50 = sphi 0, %s49
      %s66 = sphi 0, %s50
      %s76 = sphi 0, %s78
      %s79 = sphi 0, %s76
      %s80 = sphi 0, %s79
      %s96 = sphi 0, %s80
    $region4: #{tpu_custom_call.1} parent=1 // loop_header_branch
      %16 = sbr.rel (%p14) target = $region8
    $region5: #{tpu_custom_call.1} parent=1 // loop_body
      %s18 = ssub.s32 %s13, 1
      %s19 = ssub.s32 %s13, 2
      %s29 = sadd.s32 1, %s22
      %p30 = scmp.ge.s32.totalorder %s29, 1
      %s31 = scalar_select %p30, 0, %s29
      %s32 = sadd.s32 1, %s21
      %s33 = scalar_select %p30, %s32, %s21
      %p34 = scmp.ge.s32.totalorder %s33, 1
      %s35 = scalar_select %p34, 0, %s33
      %s36 = sadd.s32 1, %s20
      %s37 = scalar_select %p34, %s36, %s20
      %p38 = scmp.ge.s32.totalorder %s37, 2
      %s39 = scalar_select %p38, 0, %s37
      %s40 = ssub.s32 %s20, %s39
      %s41 = ssub.s32 %s21, %s35
      %s42 = sor.u32 %s40, %s41
      %s43 = ssub.s32 %s22, %s31
      %s44 = sor.u32 %s42, %s43
      %p45 = scmp.eq.s32.totalorder %s44, 0
      %s47 = sadd.s32 %s46, 1
      %s48 = scalar_select %p45, %s46, %s47
      %p51 = pneg %p45
      %p52 = scmp.eq.s32.totalorder %s13, 1
      %p53 = por %p51, %p52
      %p54 = scmp.ne.s32.totalorder %s46, %s49
      %p55 = scmp.eq.s32.totalorder %s13, 0
      %p56 = por %p54, %p55
      %p57 = scmp.ne.s32.totalorder %s46, %s49
      %p58 = scmp.eq.s32.totalorder %s18, 1
      %p59 = por %p57, %p58
      %p60 = scmp.ne.s32.totalorder %s49, %s50
      %p61 = scmp.eq.s32.totalorder %s18, 0
      %p62 = por %p60, %p61
      %p63 = scmp.ne.s32.totalorder %s49, %s50
      %p64 = scmp.eq.s32.totalorder %s19, 1
      %p65 = por %p63, %p64
      %p67 = scmp.ne.s32.totalorder %s50, %s66
      %p68 = scmp.eq.s32.totalorder %s19, 0
      %p69 = por %p67, %p68
      %s70 = ssub.s32 %s20, %s39
      %s71 = ssub.s32 %s21, %s35
      %s72 = sor.u32 %s70, %s71
      %s73 = ssub.s32 %s22, %s31
      %s74 = sor.u32 %s72, %s73
      %p75 = scmp.eq.s32.totalorder %s74, 0
      %s77 = sadd.s32 %s76, 1
      %s78 = scalar_select %p75, %s76, %s77
      %p81 = pneg %p75
      %p82 = scmp.eq.s32.totalorder %s13, 1
      %p83 = por %p81, %p82
      %p84 = scmp.ne.s32.totalorder %s76, %s79
      %p85 = scmp.eq.s32.totalorder %s13, 0
      %p86 = por %p84, %p85
      %p87 = scmp.ne.s32.totalorder %s76, %s79
      %p88 = scmp.eq.s32.totalorder %s18, 1
      %p89 = por %p87, %p88
      %p90 = scmp.ne.s32.totalorder %s79, %s80
      %p91 = scmp.eq.s32.totalorder %s18, 0
      %p92 = por %p90, %p91
      %p93 = scmp.ne.s32.totalorder %s79, %s80
      %p94 = scmp.eq.s32.totalorder %s19, 1
      %p95 = por %p93, %p94
      %p97 = scmp.ne.s32.totalorder %s80, %s96
      %p98 = scmp.eq.s32.totalorder %s19, 0
      %p99 = por %p97, %p98
      %p100 = scmp.le.s32.totalorder 1, %s13
      %p101 = scmp.lt.s32.totalorder %s13, 3
      %p102 = pnand %p100, %p101
      %p103 = pneg %p102
      // Predicated region
      $region9: #{tpu_custom_call.1} parent=5 // pred_check
        _
      $region10: #{tpu_custom_call.1} parent=5 // pred_check_branch
        %105 = sbr.rel (%p102) target = $region12
      $region11: #{tpu_custom_call.1} parent=5 // pred_region
        %s106 = ssub.s32 %s13, 1
      $region12: #{tpu_custom_call.1} parent=5 // pred_fallthru
        _
      %p107 = scmp.lt.s32.totalorder %s13, 2
      // Predicated region
      $region13: #{tpu_custom_call.1} parent=5 // pred_check
        %p108 = pneg %p107
      $region14: #{tpu_custom_call.1} parent=5 // pred_check_branch
        %110 = sbr.rel (%p108) target = $region16
      $region15: #{tpu_custom_call.1} parent=5 // pred_region
        // Predicated region
        $region17: #{tpu_custom_call.1} parent=15 // pred_check
          %p111 = pneg %p56
        $region18: #{tpu_custom_call.1} parent=15 // pred_check_branch
          %113 = sbr.rel (%p111) target = $region20
        $region19: #{tpu_custom_call.1} parent=15 // pred_region
          %s114 = sand.u32 %s46, 1
          %s115 = scalar_lea.sflag [#allocation3], %s114
          %s116 = sand.u32 %s46, 1
          %s117 = smul.addr %s116, 64
          %s118 = scalar_lea.vmem [#allocation2], %s117
          %s119 = smul.u32 4, %s21
          %s120 = smul.u32 2, %s22
          %s122 = ssub.s32 1024, 1024
          %123 = vsyncadd %s115, %s122
          %s124 = smul.addr %s119, 2
          %s125 = sadd.s32 %s120, %s124
          %s126 = smul.addr %s20, 8
          %s127 = sadd.s32 %s125, %s126
          %s128 = smul.addr %s127, 128
          %s129 = scalar_lea.hbm %s0, %s128
          %s130 = sshll.u32 %s118, 4
          %s131 = int_to_ptr.vmem [resolvable:$true] %s130
          %136 = dma.hbm_to_vmem [thread:$0]  %s129, 1024, %s131, %s115, 128, 128, 8
        $region20: #{tpu_custom_call.1} parent=15 // pred_fallthru
          _
      $region16: #{tpu_custom_call.1} parent=5 // pred_fallthru
        _
      %p137 = scmp.le.s32.totalorder 1, %s13
      %p138 = scmp.lt.s32.totalorder %s13, 3
      %p139 = pnand %p137, %p138
      %p140 = pneg %p139
      // Predicated region
      $region21: #{tpu_custom_call.1} parent=5 // pred_check
        _
      $region22: #{tpu_custom_call.1} parent=5 // pred_check_branch
        %142 = sbr.rel (%p139) target = $region24
      $region23: #{tpu_custom_call.1} parent=5 // pred_region
        %s143 = ssub.s32 %s13, 1
        %s144 = sand.u32 %s49, 1
        %s145 = scalar_lea.sflag [#allocation3], %s144
        %s146 = sand.u32 %s49, 1
        %s147 = smul.addr %s146, 64
        %s148 = scalar_lea.vmem [#allocation2], %s147
        // Predicated region
        $region25: #{tpu_custom_call.1} parent=23 // pred_check
          %p149 = pneg %p62
        $region26: #{tpu_custom_call.1} parent=23 // pred_check_branch
          %151 = sbr.rel (%p149) target = $region28
        $region27: #{tpu_custom_call.1} parent=23 // pred_region
          %152 = dma.done %s145, 1024
        $region28: #{tpu_custom_call.1} parent=23 // pred_fallthru
          _
        %s153 = sand.u32 %s49, 1
        %s154 = scalar_lea.sflag [#allocation3], %s153
        %s155 = sand.u32 %s49, 1
        %s156 = smul.addr %s155, 64
        %s157 = scalar_lea.vmem [#allocation2], %s156
        %p158 = pneg %p62
        %p159 = pneg %p59
        %p160 = pneg %p92
        %p161 = pneg %p89
        %s162 = sand.u32 %s79, 1
        %s163 = scalar_lea.sflag [#allocation4], %s162
        %s164 = sand.u32 %s79, 1
        %s165 = smul.addr %s164, 64
        %s166 = scalar_lea.vmem [#allocation5], %s165
        %s167 = smul.u32 4, %s24
        %s168 = smul.u32 2, %s25
        %s169 = smul.u32 4, %s24
        %s170 = smul.u32 2, %s25
        %v171 = vld [vmem:[%s148] sm:$0xff]
        %v172 = vld [vmem:[%s148 + $0x8] sm:$0xff]
        %v173 = vld [vmem:[%s148 + $0x10] sm:$0xff]
        %v174 = vld [vmem:[%s148 + $0x18] sm:$0xff]
        %v175 = vld [vmem:[%s148 + $0x20] sm:$0xff]
        %v176 = vld [vmem:[%s148 + $0x28] sm:$0xff]
        %v177 = vld [vmem:[%s148 + $0x30] sm:$0xff]
        %v178 = vld [vmem:[%s148 + $0x38] sm:$0xff]
        %v179 = vlaneseq
        %v180 = vshrl.u32 %v179, 7
        %v181 = vsub.s32 0, %v180
        %v182 = vrot.slane %v171, %v181
        %184 = vbcast.lane.b32.xlu0 %v182, 256
        %v185 = vpop.permute.xlu0 %184
        %s187 = sor.u32 256, 8
        %188 = vbcast.lane.b32.xlu0 %v182, %s187
        %v189 = vpop.permute.xlu0 %188
        %v190 = vlaneseq
        %v191 = vshrl.u32 %v190, 7
        %v192 = vsub.s32 1, %v191
        %v193 = vrot.slane %v171, %v192
        %195 = vbcast.lane.b32.xlu0 %v193, 256
        %v196 = vpop.permute.xlu0 %195
        %s198 = sor.u32 256, 8
        %199 = vbcast.lane.b32.xlu0 %v193, %s198
        %v200 = vpop.permute.xlu0 %199
        %v201 = vlaneseq
        %v202 = vshrl.u32 %v201, 7
        %v203 = vsub.s32 2, %v202
        %v204 = vrot.slane %v171, %v203
        %206 = vbcast.lane.b32.xlu0 %v204, 256
        %v207 = vpop.permute.xlu0 %206
        %s209 = sor.u32 256, 8
        %210 = vbcast.lane.b32.xlu0 %v204, %s209
        %v211 = vpop.permute.xlu0 %210
        %v212 = vlaneseq
        %v213 = vshrl.u32 %v212, 7
        %v214 = vsub.s32 3, %v213
        %v215 = vrot.slane %v171, %v214
        %217 = vbcast.lane.b32.xlu0 %v215, 256
        %v218 = vpop.permute.xlu0 %217
        %s220 = sor.u32 256, 8
        %221 = vbcast.lane.b32.xlu0 %v215, %s220
        %v222 = vpop.permute.xlu0 %221
        %v223 = vlaneseq
        %v224 = vshrl.u32 %v223, 7
        %v225 = vsub.s32 4, %v224
        %v226 = vrot.slane %v171, %v225
        %228 = vbcast.lane.b32.xlu0 %v226, 256
        %v229 = vpop.permute.xlu0 %228
        %s231 = sor.u32 256, 8
        %232 = vbcast.lane.b32.xlu0 %v226, %s231
        %v233 = vpop.permute.xlu0 %232
        %v234 = vlaneseq
        %v235 = vshrl.u32 %v234, 7
        %v236 = vsub.s32 5, %v235
        %v237 = vrot.slane %v171, %v236
        %239 = vbcast.lane.b32.xlu0 %v237, 256
        %v240 = vpop.permute.xlu0 %239
        %s242 = sor.u32 256, 8
        %243 = vbcast.lane.b32.xlu0 %v237, %s242
        %v244 = vpop.permute.xlu0 %243
        %v245 = vlaneseq
        %v246 = vshrl.u32 %v245, 7
        %v247 = vsub.s32 6, %v246
        %v248 = vrot.slane %v171, %v247
        %250 = vbcast.lane.b32.xlu0 %v248, 256
        %v251 = vpop.permute.xlu0 %250
        %s253 = sor.u32 256, 8
        %254 = vbcast.lane.b32.xlu0 %v248, %s253
        %v255 = vpop.permute.xlu0 %254
        %v256 = vlaneseq
        %v257 = vshrl.u32 %v256, 7
        %v258 = vsub.s32 7, %v257
        %v259 = vrot.slane %v171, %v258
        %261 = vbcast.lane.b32.xlu0 %v259, 256
        %v262 = vpop.permute.xlu0 %261
        %s264 = sor.u32 256, 8
        %265 = vbcast.lane.b32.xlu0 %v259, %s264
        %v266 = vpop.permute.xlu0 %265
        %v267 = vlaneseq
        %v268 = vshrl.u32 %v267, 7
        %v269 = vsub.s32 0, %v268
        %v270 = vrot.slane %v172, %v269
        %272 = vbcast.lane.b32.xlu0 %v270, 256
        %v273 = vpop.permute.xlu0 %272
        %s275 = sor.u32 256, 8
        %276 = vbcast.lane.b32.xlu0 %v270, %s275
        %v277 = vpop.permute.xlu0 %276
        %v278 = vlaneseq
        %v279 = vshrl.u32 %v278, 7
        %v280 = vsub.s32 1, %v279
        %v281 = vrot.slane %v172, %v280
        %283 = vbcast.lane.b32.xlu0 %v281, 256
        %v284 = vpop.permute.xlu0 %283
        %s286 = sor.u32 256, 8
        %287 = vbcast.lane.b32.xlu0 %v281, %s286
        %v288 = vpop.permute.xlu0 %287
        %v289 = vlaneseq
        %v290 = vshrl.u32 %v289, 7
        %v291 = vsub.s32 2, %v290
        %v292 = vrot.slane %v172, %v291
        %294 = vbcast.lane.b32.xlu0 %v292, 256
        %v295 = vpop.permute.xlu0 %294
        %s297 = sor.u32 256, 8
        %298 = vbcast.lane.b32.xlu0 %v292, %s297
        %v299 = vpop.permute.xlu0 %298
        %v300 = vlaneseq
        %v301 = vshrl.u32 %v300, 7
        %v302 = vsub.s32 3, %v301
        %v303 = vrot.slane %v172, %v302
        %305 = vbcast.lane.b32.xlu0 %v303, 256
        %v306 = vpop.permute.xlu0 %305
        %s308 = sor.u32 256, 8
        %309 = vbcast.lane.b32.xlu0 %v303, %s308
        %v310 = vpop.permute.xlu0 %309
        %v311 = vlaneseq
        %v312 = vshrl.u32 %v311, 7
        %v313 = vsub.s32 4, %v312
        %v314 = vrot.slane %v172, %v313
        %316 = vbcast.lane.b32.xlu0 %v314, 256
        %v317 = vpop.permute.xlu0 %316
        %s319 = sor.u32 256, 8
        %320 = vbcast.lane.b32.xlu0 %v314, %s319
        %v321 = vpop.permute.xlu0 %320
        %v322 = vlaneseq
        %v323 = vshrl.u32 %v322, 7
        %v324 = vsub.s32 5, %v323
        %v325 = vrot.slane %v172, %v324
        %327 = vbcast.lane.b32.xlu0 %v325, 256
        %v328 = vpop.permute.xlu0 %327
        %s330 = sor.u32 256, 8
        %331 = vbcast.lane.b32.xlu0 %v325, %s330
        %v332 = vpop.permute.xlu0 %331
        %v333 = vlaneseq
        %v334 = vshrl.u32 %v333, 7
        %v335 = vsub.s32 6, %v334
        %v336 = vrot.slane %v172, %v335
        %338 = vbcast.lane.b32.xlu0 %v336, 256
        %v339 = vpop.permute.xlu0 %338
        %s341 = sor.u32 256, 8
        %342 = vbcast.lane.b32.xlu0 %v336, %s341
        %v343 = vpop.permute.xlu0 %342
        %v344 = vlaneseq
        %v345 = vshrl.u32 %v344, 7
        %v346 = vsub.s32 7, %v345
        %v347 = vrot.slane %v172, %v346
        %349 = vbcast.lane.b32.xlu0 %v347, 256
        %v350 = vpop.permute.xlu0 %349
        %s352 = sor.u32 256, 8
        %353 = vbcast.lane.b32.xlu0 %v347, %s352
        %v354 = vpop.permute.xlu0 %353
        %v355 = vlaneseq
        %v356 = vshrl.u32 %v355, 7
        %v357 = vsub.s32 0, %v356
        %v358 = vrot.slane %v173, %v357
        %360 = vbcast.lane.b32.xlu0 %v358, 256
        %v361 = vpop.permute.xlu0 %360
        %s363 = sor.u32 256, 8
        %364 = vbcast.lane.b32.xlu0 %v358, %s363
        %v365 = vpop.permute.xlu0 %364
        %v366 = vlaneseq
        %v367 = vshrl.u32 %v366, 7
        %v368 = vsub.s32 1, %v367
        %v369 = vrot.slane %v173, %v368
        %371 = vbcast.lane.b32.xlu0 %v369, 256
        %v372 = vpop.permute.xlu0 %371
        %s374 = sor.u32 256, 8
        %375 = vbcast.lane.b32.xlu0 %v369, %s374
        %v376 = vpop.permute.xlu0 %375
        %v377 = vlaneseq
        %v378 = vshrl.u32 %v377, 7
        %v379 = vsub.s32 2, %v378
        %v380 = vrot.slane %v173, %v379
        %382 = vbcast.lane.b32.xlu0 %v380, 256
        %v383 = vpop.permute.xlu0 %382
        %s385 = sor.u32 256, 8
        %386 = vbcast.lane.b32.xlu0 %v380, %s385
        %v387 = vpop.permute.xlu0 %386
        %v388 = vlaneseq
        %v389 = vshrl.u32 %v388, 7
        %v390 = vsub.s32 3, %v389
        %v391 = vrot.slane %v173, %v390
        %393 = vbcast.lane.b32.xlu0 %v391, 256
        %v394 = vpop.permute.xlu0 %393
        %s396 = sor.u32 256, 8
        %397 = vbcast.lane.b32.xlu0 %v391, %s396
        %v398 = vpop.permute.xlu0 %397
        %v399 = vlaneseq
        %v400 = vshrl.u32 %v399, 7
        %v401 = vsub.s32 4, %v400
        %v402 = vrot.slane %v173, %v401
        %404 = vbcast.lane.b32.xlu0 %v402, 256
        %v405 = vpop.permute.xlu0 %404
        %s407 = sor.u32 256, 8
        %408 = vbcast.lane.b32.xlu0 %v402, %s407
        %v409 = vpop.permute.xlu0 %408
        %v410 = vlaneseq
        %v411 = vshrl.u32 %v410, 7
        %v412 = vsub.s32 5, %v411
        %v413 = vrot.slane %v173, %v412
        %415 = vbcast.lane.b32.xlu0 %v413, 256
        %v416 = vpop.permute.xlu0 %415
        %s418 = sor.u32 256, 8
        %419 = vbcast.lane.b32.xlu0 %v413, %s418
        %v420 = vpop.permute.xlu0 %419
        %v421 = vlaneseq
        %v422 = vshrl.u32 %v421, 7
        %v423 = vsub.s32 6, %v422
        %v424 = vrot.slane %v173, %v423
        %426 = vbcast.lane.b32.xlu0 %v424, 256
        %v427 = vpop.permute.xlu0 %426
        %s429 = sor.u32 256, 8
        %430 = vbcast.lane.b32.xlu0 %v424, %s429
        %v431 = vpop.permute.xlu0 %430
        %v432 = vlaneseq
        %v433 = vshrl.u32 %v432, 7
        %v434 = vsub.s32 7, %v433
        %v435 = vrot.slane %v173, %v434
        %437 = vbcast.lane.b32.xlu0 %v435, 256
        %v438 = vpop.permute.xlu0 %437
        %s440 = sor.u32 256, 8
        %441 = vbcast.lane.b32.xlu0 %v435, %s440
        %v442 = vpop.permute.xlu0 %441
        %v443 = vlaneseq
        %v444 = vshrl.u32 %v443, 7
        %v445 = vsub.s32 0, %v444
        %v446 = vrot.slane %v174, %v445
        %448 = vbcast.lane.b32.xlu0 %v446, 256
        %v449 = vpop.permute.xlu0 %448
        %s451 = sor.u32 256, 8
        %452 = vbcast.lane.b32.xlu0 %v446, %s451
        %v453 = vpop.permute.xlu0 %452
        %v454 = vlaneseq
        %v455 = vshrl.u32 %v454, 7
        %v456 = vsub.s32 1, %v455
        %v457 = vrot.slane %v174, %v456
        %459 = vbcast.lane.b32.xlu0 %v457, 256
        %v460 = vpop.permute.xlu0 %459
        %s462 = sor.u32 256, 8
        %463 = vbcast.lane.b32.xlu0 %v457, %s462
        %v464 = vpop.permute.xlu0 %463
        %v465 = vlaneseq
        %v466 = vshrl.u32 %v465, 7
        %v467 = vsub.s32 2, %v466
        %v468 = vrot.slane %v174, %v467
        %470 = vbcast.lane.b32.xlu0 %v468, 256
        %v471 = vpop.permute.xlu0 %470
        %s473 = sor.u32 256, 8
        %474 = vbcast.lane.b32.xlu0 %v468, %s473
        %v475 = vpop.permute.xlu0 %474
        %v476 = vlaneseq
        %v477 = vshrl.u32 %v476, 7
        %v478 = vsub.s32 3, %v477
        %v479 = vrot.slane %v174, %v478
        %481 = vbcast.lane.b32.xlu0 %v479, 256
        %v482 = vpop.permute.xlu0 %481
        %s484 = sor.u32 256, 8
        %485 = vbcast.lane.b32.xlu0 %v479, %s484
        %v486 = vpop.permute.xlu0 %485
        %v487 = vlaneseq
        %v488 = vshrl.u32 %v487, 7
        %v489 = vsub.s32 4, %v488
        %v490 = vrot.slane %v174, %v489
        %492 = vbcast.lane.b32.xlu0 %v490, 256
        %v493 = vpop.permute.xlu0 %492
        %s495 = sor.u32 256, 8
        %496 = vbcast.lane.b32.xlu0 %v490, %s495
        %v497 = vpop.permute.xlu0 %496
        %v498 = vlaneseq
        %v499 = vshrl.u32 %v498, 7
        %v500 = vsub.s32 5, %v499
        %v501 = vrot.slane %v174, %v500
        %503 = vbcast.lane.b32.xlu0 %v501, 256
        %v504 = vpop.permute.xlu0 %503
        %s506 = sor.u32 256, 8
        %507 = vbcast.lane.b32.xlu0 %v501, %s506
        %v508 = vpop.permute.xlu0 %507
        %v509 = vlaneseq
        %v510 = vshrl.u32 %v509, 7
        %v511 = vsub.s32 6, %v510
        %v512 = vrot.slane %v174, %v511
        %514 = vbcast.lane.b32.xlu0 %v512, 256
        %v515 = vpop.permute.xlu0 %514
        %s517 = sor.u32 256, 8
        %518 = vbcast.lane.b32.xlu0 %v512, %s517
        %v519 = vpop.permute.xlu0 %518
        %v520 = vlaneseq
        %v521 = vshrl.u32 %v520, 7
        %v522 = vsub.s32 7, %v521
        %v523 = vrot.slane %v174, %v522
        %525 = vbcast.lane.b32.xlu0 %v523, 256
        %v526 = vpop.permute.xlu0 %525
        %s528 = sor.u32 256, 8
        %529 = vbcast.lane.b32.xlu0 %v523, %s528
        %v530 = vpop.permute.xlu0 %529
        %v531 = vlaneseq
        %v532 = vshrl.u32 %v531, 7
        %v533 = vsub.s32 0, %v532
        %v534 = vrot.slane %v175, %v533
        %536 = vbcast.lane.b32.xlu0 %v534, 256
        %v537 = vpop.permute.xlu0 %536
        %s539 = sor.u32 256, 8
        %540 = vbcast.lane.b32.xlu0 %v534, %s539
        %v541 = vpop.permute.xlu0 %540
        %v542 = vlaneseq
        %v543 = vshrl.u32 %v542, 7
        %v544 = vsub.s32 1, %v543
        %v545 = vrot.slane %v175, %v544
        %547 = vbcast.lane.b32.xlu0 %v545, 256
        %v548 = vpop.permute.xlu0 %547
        %s550 = sor.u32 256, 8
        %551 = vbcast.lane.b32.xlu0 %v545, %s550
        %v552 = vpop.permute.xlu0 %551
        %v553 = vlaneseq
        %v554 = vshrl.u32 %v553, 7
        %v555 = vsub.s32 2, %v554
        %v556 = vrot.slane %v175, %v555
        %558 = vbcast.lane.b32.xlu0 %v556, 256
        %v559 = vpop.permute.xlu0 %558
        %s561 = sor.u32 256, 8
        %562 = vbcast.lane.b32.xlu0 %v556, %s561
        %v563 = vpop.permute.xlu0 %562
        %v564 = vlaneseq
        %v565 = vshrl.u32 %v564, 7
        %v566 = vsub.s32 3, %v565
        %v567 = vrot.slane %v175, %v566
        %569 = vbcast.lane.b32.xlu0 %v567, 256
        %v570 = vpop.permute.xlu0 %569
        %s572 = sor.u32 256, 8
        %573 = vbcast.lane.b32.xlu0 %v567, %s572
        %v574 = vpop.permute.xlu0 %573
        %v575 = vlaneseq
        %v576 = vshrl.u32 %v575, 7
        %v577 = vsub.s32 4, %v576
        %v578 = vrot.slane %v175, %v577
        %580 = vbcast.lane.b32.xlu0 %v578, 256
        %v581 = vpop.permute.xlu0 %580
        %s583 = sor.u32 256, 8
        %584 = vbcast.lane.b32.xlu0 %v578, %s583
        %v585 = vpop.permute.xlu0 %584
        %v586 = vlaneseq
        %v587 = vshrl.u32 %v586, 7
        %v588 = vsub.s32 5, %v587
        %v589 = vrot.slane %v175, %v588
        %591 = vbcast.lane.b32.xlu0 %v589, 256
        %v592 = vpop.permute.xlu0 %591
        %s594 = sor.u32 256, 8
        %595 = vbcast.lane.b32.xlu0 %v589, %s594
        %v596 = vpop.permute.xlu0 %595
        %v597 = vlaneseq
        %v598 = vshrl.u32 %v597, 7
        %v599 = vsub.s32 6, %v598
        %v600 = vrot.slane %v175, %v599
        %602 = vbcast.lane.b32.xlu0 %v600, 256
        %v603 = vpop.permute.xlu0 %602
        %s605 = sor.u32 256, 8
        %606 = vbcast.lane.b32.xlu0 %v600, %s605
        %v607 = vpop.permute.xlu0 %606
        %v608 = vlaneseq
        %v609 = vshrl.u32 %v608, 7
        %v610 = vsub.s32 7, %v609
        %v611 = vrot.slane %v175, %v610
        %613 = vbcast.lane.b32.xlu0 %v611, 256
        %v614 = vpop.permute.xlu0 %613
        %s616 = sor.u32 256, 8
        %617 = vbcast.lane.b32.xlu0 %v611, %s616
        %v618 = vpop.permute.xlu0 %617
        %v619 = vlaneseq
        %v620 = vshrl.u32 %v619, 7
        %v621 = vsub.s32 0, %v620
        %v622 = vrot.slane %v176, %v621
        %624 = vbcast.lane.b32.xlu0 %v622, 256
        %v625 = vpop.permute.xlu0 %624
        %s627 = sor.u32 256, 8
        %628 = vbcast.lane.b32.xlu0 %v622, %s627
        %v629 = vpop.permute.xlu0 %628
        %v630 = vlaneseq
        %v631 = vshrl.u32 %v630, 7
        %v632 = vsub.s32 1, %v631
        %v633 = vrot.slane %v176, %v632
        %635 = vbcast.lane.b32.xlu0 %v633, 256
        %v636 = vpop.permute.xlu0 %635
        %s638 = sor.u32 256, 8
        %639 = vbcast.lane.b32.xlu0 %v633, %s638
        %v640 = vpop.permute.xlu0 %639
        %v641 = vlaneseq
        %v642 = vshrl.u32 %v641, 7
        %v643 = vsub.s32 2, %v642
        %v644 = vrot.slane %v176, %v643
        %646 = vbcast.lane.b32.xlu0 %v644, 256
        %v647 = vpop.permute.xlu0 %646
        %s649 = sor.u32 256, 8
        %650 = vbcast.lane.b32.xlu0 %v644, %s649
        %v651 = vpop.permute.xlu0 %650
        %v652 = vlaneseq
        %v653 = vshrl.u32 %v652, 7
        %v654 = vsub.s32 3, %v653
        %v655 = vrot.slane %v176, %v654
        %657 = vbcast.lane.b32.xlu0 %v655, 256
        %v658 = vpop.permute.xlu0 %657
        %s660 = sor.u32 256, 8
        %661 = vbcast.lane.b32.xlu0 %v655, %s660
        %v662 = vpop.permute.xlu0 %661
        %v663 = vlaneseq
        %v664 = vshrl.u32 %v663, 7
        %v665 = vsub.s32 4, %v664
        %v666 = vrot.slane %v176, %v665
        %668 = vbcast.lane.b32.xlu0 %v666, 256
        %v669 = vpop.permute.xlu0 %668
        %s671 = sor.u32 256, 8
        %672 = vbcast.lane.b32.xlu0 %v666, %s671
        %v673 = vpop.permute.xlu0 %672
        %v674 = vlaneseq
        %v675 = vshrl.u32 %v674, 7
        %v676 = vsub.s32 5, %v675
        %v677 = vrot.slane %v176, %v676
        %679 = vbcast.lane.b32.xlu0 %v677, 256
        %v680 = vpop.permute.xlu0 %679
        %s682 = sor.u32 256, 8
        %683 = vbcast.lane.b32.xlu0 %v677, %s682
        %v684 = vpop.permute.xlu0 %683
        %v685 = vlaneseq
        %v686 = vshrl.u32 %v685, 7
        %v687 = vsub.s32 6, %v686
        %v688 = vrot.slane %v176, %v687
        %690 = vbcast.lane.b32.xlu0 %v688, 256
        %v691 = vpop.permute.xlu0 %690
        %s693 = sor.u32 256, 8
        %694 = vbcast.lane.b32.xlu0 %v688, %s693
        %v695 = vpop.permute.xlu0 %694
        %v696 = vlaneseq
        %v697 = vshrl.u32 %v696, 7
        %v698 = vsub.s32 7, %v697
        %v699 = vrot.slane %v176, %v698
        %701 = vbcast.lane.b32.xlu0 %v699, 256
        %v702 = vpop.permute.xlu0 %701
        %s704 = sor.u32 256, 8
        %705 = vbcast.lane.b32.xlu0 %v699, %s704
        %v706 = vpop.permute.xlu0 %705
        %v707 = vlaneseq
        %v708 = vshrl.u32 %v707, 7
        %v709 = vsub.s32 0, %v708
        %v710 = vrot.slane %v177, %v709
        %712 = vbcast.lane.b32.xlu0 %v710, 256
        %v713 = vpop.permute.xlu0 %712
        %s715 = sor.u32 256, 8
        %716 = vbcast.lane.b32.xlu0 %v710, %s715
        %v717 = vpop.permute.xlu0 %716
        %v718 = vlaneseq
        %v719 = vshrl.u32 %v718, 7
        %v720 = vsub.s32 1, %v719
        %v721 = vrot.slane %v177, %v720
        %723 = vbcast.lane.b32.xlu0 %v721, 256
        %v724 = vpop.permute.xlu0 %723
        %s726 = sor.u32 256, 8
        %727 = vbcast.lane.b32.xlu0 %v721, %s726
        %v728 = vpop.permute.xlu0 %727
        %v729 = vlaneseq
        %v730 = vshrl.u32 %v729, 7
        %v731 = vsub.s32 2, %v730
        %v732 = vrot.slane %v177, %v731
        %734 = vbcast.lane.b32.xlu0 %v732, 256
        %v735 = vpop.permute.xlu0 %734
        %s737 = sor.u32 256, 8
        %738 = vbcast.lane.b32.xlu0 %v732, %s737
        %v739 = vpop.permute.xlu0 %738
        %v740 = vlaneseq
        %v741 = vshrl.u32 %v740, 7
        %v742 = vsub.s32 3, %v741
        %v743 = vrot.slane %v177, %v742
        %745 = vbcast.lane.b32.xlu0 %v743, 256
        %v746 = vpop.permute.xlu0 %745
        %s748 = sor.u32 256, 8
        %749 = vbcast.lane.b32.xlu0 %v743, %s748
        %v750 = vpop.permute.xlu0 %749
        %v751 = vlaneseq
        %v752 = vshrl.u32 %v751, 7
        %v753 = vsub.s32 4, %v752
        %v754 = vrot.slane %v177, %v753
        %756 = vbcast.lane.b32.xlu0 %v754, 256
        %v757 = vpop.permute.xlu0 %756
        %s759 = sor.u32 256, 8
        %760 = vbcast.lane.b32.xlu0 %v754, %s759
        %v761 = vpop.permute.xlu0 %760
        %v762 = vlaneseq
        %v763 = vshrl.u32 %v762, 7
        %v764 = vsub.s32 5, %v763
        %v765 = vrot.slane %v177, %v764
        %767 = vbcast.lane.b32.xlu0 %v765, 256
        %v768 = vpop.permute.xlu0 %767
        %s770 = sor.u32 256, 8
        %771 = vbcast.lane.b32.xlu0 %v765, %s770
        %v772 = vpop.permute.xlu0 %771
        %v773 = vlaneseq
        %v774 = vshrl.u32 %v773, 7
        %v775 = vsub.s32 6, %v774
        %v776 = vrot.slane %v177, %v775
        %778 = vbcast.lane.b32.xlu0 %v776, 256
        %v779 = vpop.permute.xlu0 %778
        %s781 = sor.u32 256, 8
        %782 = vbcast.lane.b32.xlu0 %v776, %s781
        %v783 = vpop.permute.xlu0 %782
        %v784 = vlaneseq
        %v785 = vshrl.u32 %v784, 7
        %v786 = vsub.s32 7, %v785
        %v787 = vrot.slane %v177, %v786
        %789 = vbcast.lane.b32.xlu0 %v787, 256
        %v790 = vpop.permute.xlu0 %789
        %s792 = sor.u32 256, 8
        %793 = vbcast.lane.b32.xlu0 %v787, %s792
        %v794 = vpop.permute.xlu0 %793
        %v795 = vlaneseq
        %v796 = vshrl.u32 %v795, 7
        %v797 = vsub.s32 0, %v796
        %v798 = vrot.slane %v178, %v797
        %800 = vbcast.lane.b32.xlu0 %v798, 256
        %v801 = vpop.permute.xlu0 %800
        %s803 = sor.u32 256, 8
        %804 = vbcast.lane.b32.xlu0 %v798, %s803
        %v805 = vpop.permute.xlu0 %804
        %v806 = vlaneseq
        %v807 = vshrl.u32 %v806, 7
        %v808 = vsub.s32 1, %v807
        %v809 = vrot.slane %v178, %v808
        %811 = vbcast.lane.b32.xlu0 %v809, 256
        %v812 = vpop.permute.xlu0 %811
        %s814 = sor.u32 256, 8
        %815 = vbcast.lane.b32.xlu0 %v809, %s814
        %v816 = vpop.permute.xlu0 %815
        %v817 = vlaneseq
        %v818 = vshrl.u32 %v817, 7
        %v819 = vsub.s32 2, %v818
        %v820 = vrot.slane %v178, %v819
        %822 = vbcast.lane.b32.xlu0 %v820, 256
        %v823 = vpop.permute.xlu0 %822
        %s825 = sor.u32 256, 8
        %826 = vbcast.lane.b32.xlu0 %v820, %s825
        %v827 = vpop.permute.xlu0 %826
        %v828 = vlaneseq
        %v829 = vshrl.u32 %v828, 7
        %v830 = vsub.s32 3, %v829
        %v831 = vrot.slane %v178, %v830
        %833 = vbcast.lane.b32.xlu0 %v831, 256
        %v834 = vpop.permute.xlu0 %833
        %s836 = sor.u32 256, 8
        %837 = vbcast.lane.b32.xlu0 %v831, %s836
        %v838 = vpop.permute.xlu0 %837
        %v839 = vlaneseq
        %v840 = vshrl.u32 %v839, 7
        %v841 = vsub.s32 4, %v840
        %v842 = vrot.slane %v178, %v841
        %844 = vbcast.lane.b32.xlu0 %v842, 256
        %v845 = vpop.permute.xlu0 %844
        %s847 = sor.u32 256, 8
        %848 = vbcast.lane.b32.xlu0 %v842, %s847
        %v849 = vpop.permute.xlu0 %848
        %v850 = vlaneseq
        %v851 = vshrl.u32 %v850, 7
        %v852 = vsub.s32 5, %v851
        %v853 = vrot.slane %v178, %v852
        %855 = vbcast.lane.b32.xlu0 %v853, 256
        %v856 = vpop.permute.xlu0 %855
        %s858 = sor.u32 256, 8
        %859 = vbcast.lane.b32.xlu0 %v853, %s858
        %v860 = vpop.permute.xlu0 %859
        %v861 = vlaneseq
        %v862 = vshrl.u32 %v861, 7
        %v863 = vsub.s32 6, %v862
        %v864 = vrot.slane %v178, %v863
        %866 = vbcast.lane.b32.xlu0 %v864, 256
        %v867 = vpop.permute.xlu0 %866
        %s869 = sor.u32 256, 8
        %870 = vbcast.lane.b32.xlu0 %v864, %s869
        %v871 = vpop.permute.xlu0 %870
        %v872 = vlaneseq
        %v873 = vshrl.u32 %v872, 7
        %v874 = vsub.s32 7, %v873
        %v875 = vrot.slane %v178, %v874
        %877 = vbcast.lane.b32.xlu0 %v875, 256
        %v878 = vpop.permute.xlu0 %877
        %s880 = sor.u32 256, 8
        %881 = vbcast.lane.b32.xlu0 %v875, %s880
        %v882 = vpop.permute.xlu0 %881
        %v883 = vcombine.low %v185, %v207
        %v884 = vcombine.high %v185, %v207
        %v886 = vunpack.c.l.s4 1983009808
        %v887 = vunpack.c.0.s8 %v886
        %v888 = vlaneseq
        %v889 = vshrl.u32 %v888, 7
        %v890 = vsub.s32 %v887, %v889
        %v891 = vrot.slane %v883, %v890
        %v893 = vunpack.c.l.s4 1983009808
        %v894 = vunpack.c.0.s8 %v893
        %v895 = vlaneseq
        %v896 = vshrl.u32 %v895, 7
        %v897 = vsub.s32 %v894, %v896
        %v898 = vrot.slane %v884, %v897
        %v899 = vcombine.low %v196, %v218
        %v900 = vcombine.high %v196, %v218
        %v902 = vunpack.c.l.s4 1983009808
        %v903 = vunpack.c.0.s8 %v902
        %v904 = vlaneseq
        %v905 = vshrl.u32 %v904, 7
        %v906 = vsub.s32 %v903, %v905
        %v907 = vrot.slane %v899, %v906
        %v909 = vunpack.c.l.s4 1983009808
        %v910 = vunpack.c.0.s8 %v909
        %v911 = vlaneseq
        %v912 = vshrl.u32 %v911, 7
        %v913 = vsub.s32 %v910, %v912
        %v914 = vrot.slane %v900, %v913
        %v915 = vcombine.low %v229, %v251
        %v916 = vcombine.high %v229, %v251
        %v918 = vunpack.c.l.s4 1983009808
        %v919 = vunpack.c.0.s8 %v918
        %v920 = vlaneseq
        %v921 = vshrl.u32 %v920, 7
        %v922 = vsub.s32 %v919, %v921
        %v923 = vrot.slane %v915, %v922
        %v925 = vunpack.c.l.s4 1983009808
        %v926 = vunpack.c.0.s8 %v925
        %v927 = vlaneseq
        %v928 = vshrl.u32 %v927, 7
        %v929 = vsub.s32 %v926, %v928
        %v930 = vrot.slane %v916, %v929
        %v931 = vcombine.low %v240, %v262
        %v932 = vcombine.high %v240, %v262
        %v934 = vunpack.c.l.s4 1983009808
        %v935 = vunpack.c.0.s8 %v934
        %v936 = vlaneseq
        %v937 = vshrl.u32 %v936, 7
        %v938 = vsub.s32 %v935, %v937
        %v939 = vrot.slane %v931, %v938
        %v941 = vunpack.c.l.s4 1983009808
        %v942 = vunpack.c.0.s8 %v941
        %v943 = vlaneseq
        %v944 = vshrl.u32 %v943, 7
        %v945 = vsub.s32 %v942, %v944
        %v946 = vrot.slane %v932, %v945
        %v947 = vcombine.low %v891, %v907
        %v948 = vcombine.high %v891, %v907
        %v950 = vunpack.c.l.s4 1934713408
        %v951 = vunpack.c.0.s8 %v950
        %v952 = vlaneseq
        %v953 = vshrl.u32 %v952, 7
        %v954 = vsub.s32 %v951, %v953
        %v955 = vrot.slane %v947, %v954
        %v957 = vunpack.c.l.s4 1934713408
        %v958 = vunpack.c.0.s8 %v957
        %v959 = vlaneseq
        %v960 = vshrl.u32 %v959, 7
        %v961 = vsub.s32 %v958, %v960
        %v962 = vrot.slane %v948, %v961
        %v963 = vcombine.low %v898, %v914
        %v964 = vcombine.high %v898, %v914
        %v966 = vunpack.c.l.s4 1934713408
        %v967 = vunpack.c.0.s8 %v966
        %v968 = vlaneseq
        %v969 = vshrl.u32 %v968, 7
        %v970 = vsub.s32 %v967, %v969
        %v971 = vrot.slane %v963, %v970
        %v973 = vunpack.c.l.s4 1934713408
        %v974 = vunpack.c.0.s8 %v973
        %v975 = vlaneseq
        %v976 = vshrl.u32 %v975, 7
        %v977 = vsub.s32 %v974, %v976
        %v978 = vrot.slane %v964, %v977
        %v979 = vcombine.low %v923, %v939
        %v980 = vcombine.high %v923, %v939
        %v982 = vunpack.c.l.s4 1934713408
        %v983 = vunpack.c.0.s8 %v982
        %v984 = vlaneseq
        %v985 = vshrl.u32 %v984, 7
        %v986 = vsub.s32 %v983, %v985
        %v987 = vrot.slane %v979, %v986
        %v989 = vunpack.c.l.s4 1934713408
        %v990 = vunpack.c.0.s8 %v989
        %v991 = vlaneseq
        %v992 = vshrl.u32 %v991, 7
        %v993 = vsub.s32 %v990, %v992
        %v994 = vrot.slane %v980, %v993
        %v995 = vcombine.low %v930, %v946
        %v996 = vcombine.high %v930, %v946
        %v998 = vunpack.c.l.s4 1934713408
        %v999 = vunpack.c.0.s8 %v998
        %v1000 = vlaneseq
        %v1001 = vshrl.u32 %v1000, 7
        %v1002 = vsub.s32 %v999, %v1001
        %v1003 = vrot.slane %v995, %v1002
        %v1005 = vunpack.c.l.s4 1934713408
        %v1006 = vunpack.c.0.s8 %v1005
        %v1007 = vlaneseq
        %v1008 = vshrl.u32 %v1007, 7
        %v1009 = vsub.s32 %v1006, %v1008
        %v1010 = vrot.slane %v996, %v1009
        %v1011 = vcombine.low %v955, %v987
        %v1012 = vcombine.high %v955, %v987
        %v1013 = vcombine.low %v962, %v994
        %v1014 = vcombine.high %v962, %v994
        %v1015 = vcombine.low %v971, %v1003
        %v1016 = vcombine.high %v971, %v1003
        %v1017 = vcombine.low %v978, %v1010
        %v1018 = vcombine.high %v978, %v1010
        %v1019 = vcombine.low %v273, %v295
        %v1020 = vcombine.high %v273, %v295
        %v1022 = vunpack.c.l.s4 1983009808
        %v1023 = vunpack.c.0.s8 %v1022
        %v1024 = vlaneseq
        %v1025 = vshrl.u32 %v1024, 7
        %v1026 = vsub.s32 %v1023, %v1025
        %v1027 = vrot.slane %v1019, %v1026
        %v1029 = vunpack.c.l.s4 1983009808
        %v1030 = vunpack.c.0.s8 %v1029
        %v1031 = vlaneseq
        %v1032 = vshrl.u32 %v1031, 7
        %v1033 = vsub.s32 %v1030, %v1032
        %v1034 = vrot.slane %v1020, %v1033
        %v1035 = vcombine.low %v284, %v306
        %v1036 = vcombine.high %v284, %v306
        %v1038 = vunpack.c.l.s4 1983009808
        %v1039 = vunpack.c.0.s8 %v1038
        %v1040 = vlaneseq
        %v1041 = vshrl.u32 %v1040, 7
        %v1042 = vsub.s32 %v1039, %v1041
        %v1043 = vrot.slane %v1035, %v1042
        %v1045 = vunpack.c.l.s4 1983009808
        %v1046 = vunpack.c.0.s8 %v1045
        %v1047 = vlaneseq
        %v1048 = vshrl.u32 %v1047, 7
        %v1049 = vsub.s32 %v1046, %v1048
        %v1050 = vrot.slane %v1036, %v1049
        %v1051 = vcombine.low %v317, %v339
        %v1052 = vcombine.high %v317, %v339
        %v1054 = vunpack.c.l.s4 1983009808
        %v1055 = vunpack.c.0.s8 %v1054
        %v1056 = vlaneseq
        %v1057 = vshrl.u32 %v1056, 7
        %v1058 = vsub.s32 %v1055, %v1057
        %v1059 = vrot.slane %v1051, %v1058
        %v1061 = vunpack.c.l.s4 1983009808
        %v1062 = vunpack.c.0.s8 %v1061
        %v1063 = vlaneseq
        %v1064 = vshrl.u32 %v1063, 7
        %v1065 = vsub.s32 %v1062, %v1064
        %v1066 = vrot.slane %v1052, %v1065
        %v1067 = vcombine.low %v328, %v350
        %v1068 = vcombine.high %v328, %v350
        %v1070 = vunpack.c.l.s4 1983009808
        %v1071 = vunpack.c.0.s8 %v1070
        %v1072 = vlaneseq
        %v1073 = vshrl.u32 %v1072, 7
        %v1074 = vsub.s32 %v1071, %v1073
        %v1075 = vrot.slane %v1067, %v1074
        %v1077 = vunpack.c.l.s4 1983009808
        %v1078 = vunpack.c.0.s8 %v1077
        %v1079 = vlaneseq
        %v1080 = vshrl.u32 %v1079, 7
        %v1081 = vsub.s32 %v1078, %v1080
        %v1082 = vrot.slane %v1068, %v1081
        %v1083 = vcombine.low %v1027, %v1043
        %v1084 = vcombine.high %v1027, %v1043
        %v1086 = vunpack.c.l.s4 1934713408
        %v1087 = vunpack.c.0.s8 %v1086
        %v1088 = vlaneseq
        %v1089 = vshrl.u32 %v1088, 7
        %v1090 = vsub.s32 %v1087, %v1089
        %v1091 = vrot.slane %v1083, %v1090
        %v1093 = vunpack.c.l.s4 1934713408
        %v1094 = vunpack.c.0.s8 %v1093
        %v1095 = vlaneseq
        %v1096 = vshrl.u32 %v1095, 7
        %v1097 = vsub.s32 %v1094, %v1096
        %v1098 = vrot.slane %v1084, %v1097
        %v1099 = vcombine.low %v1034, %v1050
        %v1100 = vcombine.high %v1034, %v1050
        %v1102 = vunpack.c.l.s4 1934713408
        %v1103 = vunpack.c.0.s8 %v1102
        %v1104 = vlaneseq
        %v1105 = vshrl.u32 %v1104, 7
        %v1106 = vsub.s32 %v1103, %v1105
        %v1107 = vrot.slane %v1099, %v1106
        %v1109 = vunpack.c.l.s4 1934713408
        %v1110 = vunpack.c.0.s8 %v1109
        %v1111 = vlaneseq
        %v1112 = vshrl.u32 %v1111, 7
        %v1113 = vsub.s32 %v1110, %v1112
        %v1114 = vrot.slane %v1100, %v1113
        %v1115 = vcombine.low %v1059, %v1075
        %v1116 = vcombine.high %v1059, %v1075
        %v1118 = vunpack.c.l.s4 1934713408
        %v1119 = vunpack.c.0.s8 %v1118
        %v1120 = vlaneseq
        %v1121 = vshrl.u32 %v1120, 7
        %v1122 = vsub.s32 %v1119, %v1121
        %v1123 = vrot.slane %v1115, %v1122
        %v1125 = vunpack.c.l.s4 1934713408
        %v1126 = vunpack.c.0.s8 %v1125
        %v1127 = vlaneseq
        %v1128 = vshrl.u32 %v1127, 7
        %v1129 = vsub.s32 %v1126, %v1128
        %v1130 = vrot.slane %v1116, %v1129
        %v1131 = vcombine.low %v1066, %v1082
        %v1132 = vcombine.high %v1066, %v1082
        %v1134 = vunpack.c.l.s4 1934713408
        %v1135 = vunpack.c.0.s8 %v1134
        %v1136 = vlaneseq
        %v1137 = vshrl.u32 %v1136, 7
        %v1138 = vsub.s32 %v1135, %v1137
        %v1139 = vrot.slane %v1131, %v1138
        %v1141 = vunpack.c.l.s4 1934713408
        %v1142 = vunpack.c.0.s8 %v1141
        %v1143 = vlaneseq
        %v1144 = vshrl.u32 %v1143, 7
        %v1145 = vsub.s32 %v1142, %v1144
        %v1146 = vrot.slane %v1132, %v1145
        %v1147 = vcombine.low %v1091, %v1123
        %v1148 = vcombine.high %v1091, %v1123
        %v1149 = vcombine.low %v1098, %v1130
        %v1150 = vcombine.high %v1098, %v1130
        %v1151 = vcombine.low %v1107, %v1139
        %v1152 = vcombine.high %v1107, %v1139
        %v1153 = vcombine.low %v1114, %v1146
        %v1154 = vcombine.high %v1114, %v1146
        %v1155 = vcombine.low %v189, %v211
        %v1156 = vcombine.high %v189, %v211
        %v1158 = vunpack.c.l.s4 1983009808
        %v1159 = vunpack.c.0.s8 %v1158
        %v1160 = vlaneseq
        %v1161 = vshrl.u32 %v1160, 7
        %v1162 = vsub.s32 %v1159, %v1161
        %v1163 = vrot.slane %v1155, %v1162
        %v1165 = vunpack.c.l.s4 1983009808
        %v1166 = vunpack.c.0.s8 %v1165
        %v1167 = vlaneseq
        %v1168 = vshrl.u32 %v1167, 7
        %v1169 = vsub.s32 %v1166, %v1168
        %v1170 = vrot.slane %v1156, %v1169
        %v1171 = vcombine.low %v200, %v222
        %v1172 = vcombine.high %v200, %v222
        %v1174 = vunpack.c.l.s4 1983009808
        %v1175 = vunpack.c.0.s8 %v1174
        %v1176 = vlaneseq
        %v1177 = vshrl.u32 %v1176, 7
        %v1178 = vsub.s32 %v1175, %v1177
        %v1179 = vrot.slane %v1171, %v1178
        %v1181 = vunpack.c.l.s4 1983009808
        %v1182 = vunpack.c.0.s8 %v1181
        %v1183 = vlaneseq
        %v1184 = vshrl.u32 %v1183, 7
        %v1185 = vsub.s32 %v1182, %v1184
        %v1186 = vrot.slane %v1172, %v1185
        %v1187 = vcombine.low %v233, %v255
        %v1188 = vcombine.high %v233, %v255
        %v1190 = vunpack.c.l.s4 1983009808
        %v1191 = vunpack.c.0.s8 %v1190
        %v1192 = vlaneseq
        %v1193 = vshrl.u32 %v1192, 7
        %v1194 = vsub.s32 %v1191, %v1193
        %v1195 = vrot.slane %v1187, %v1194
        %v1197 = vunpack.c.l.s4 1983009808
        %v1198 = vunpack.c.0.s8 %v1197
        %v1199 = vlaneseq
        %v1200 = vshrl.u32 %v1199, 7
        %v1201 = vsub.s32 %v1198, %v1200
        %v1202 = vrot.slane %v1188, %v1201
        %v1203 = vcombine.low %v244, %v266
        %v1204 = vcombine.high %v244, %v266
        %v1206 = vunpack.c.l.s4 1983009808
        %v1207 = vunpack.c.0.s8 %v1206
        %v1208 = vlaneseq
        %v1209 = vshrl.u32 %v1208, 7
        %v1210 = vsub.s32 %v1207, %v1209
        %v1211 = vrot.slane %v1203, %v1210
        %v1213 = vunpack.c.l.s4 1983009808
        %v1214 = vunpack.c.0.s8 %v1213
        %v1215 = vlaneseq
        %v1216 = vshrl.u32 %v1215, 7
        %v1217 = vsub.s32 %v1214, %v1216
        %v1218 = vrot.slane %v1204, %v1217
        %v1219 = vcombine.low %v1163, %v1179
        %v1220 = vcombine.high %v1163, %v1179
        %v1222 = vunpack.c.l.s4 1934713408
        %v1223 = vunpack.c.0.s8 %v1222
        %v1224 = vlaneseq
        %v1225 = vshrl.u32 %v1224, 7
        %v1226 = vsub.s32 %v1223, %v1225
        %v1227 = vrot.slane %v1219, %v1226
        %v1229 = vunpack.c.l.s4 1934713408
        %v1230 = vunpack.c.0.s8 %v1229
        %v1231 = vlaneseq
        %v1232 = vshrl.u32 %v1231, 7
        %v1233 = vsub.s32 %v1230, %v1232
        %v1234 = vrot.slane %v1220, %v1233
        %v1235 = vcombine.low %v1170, %v1186
        %v1236 = vcombine.high %v1170, %v1186
        %v1238 = vunpack.c.l.s4 1934713408
        %v1239 = vunpack.c.0.s8 %v1238
        %v1240 = vlaneseq
        %v1241 = vshrl.u32 %v1240, 7
        %v1242 = vsub.s32 %v1239, %v1241
        %v1243 = vrot.slane %v1235, %v1242
        %v1245 = vunpack.c.l.s4 1934713408
        %v1246 = vunpack.c.0.s8 %v1245
        %v1247 = vlaneseq
        %v1248 = vshrl.u32 %v1247, 7
        %v1249 = vsub.s32 %v1246, %v1248
        %v1250 = vrot.slane %v1236, %v1249
        %v1251 = vcombine.low %v1195, %v1211
        %v1252 = vcombine.high %v1195, %v1211
        %v1254 = vunpack.c.l.s4 1934713408
        %v1255 = vunpack.c.0.s8 %v1254
        %v1256 = vlaneseq
        %v1257 = vshrl.u32 %v1256, 7
        %v1258 = vsub.s32 %v1255, %v1257
        %v1259 = vrot.slane %v1251, %v1258
        %v1261 = vunpack.c.l.s4 1934713408
        %v1262 = vunpack.c.0.s8 %v1261
        %v1263 = vlaneseq
        %v1264 = vshrl.u32 %v1263, 7
        %v1265 = vsub.s32 %v1262, %v1264
        %v1266 = vrot.slane %v1252, %v1265
        %v1267 = vcombine.low %v1202, %v1218
        %v1268 = vcombine.high %v1202, %v1218
        %v1270 = vunpack.c.l.s4 1934713408
        %v1271 = vunpack.c.0.s8 %v1270
        %v1272 = vlaneseq
        %v1273 = vshrl.u32 %v1272, 7
        %v1274 = vsub.s32 %v1271, %v1273
        %v1275 = vrot.slane %v1267, %v1274
        %v1277 = vunpack.c.l.s4 1934713408
        %v1278 = vunpack.c.0.s8 %v1277
        %v1279 = vlaneseq
        %v1280 = vshrl.u32 %v1279, 7
        %v1281 = vsub.s32 %v1278, %v1280
        %v1282 = vrot.slane %v1268, %v1281
        %v1283 = vcombine.low %v1227, %v1259
        %v1284 = vcombine.high %v1227, %v1259
        %v1285 = vcombine.low %v1234, %v1266
        %v1286 = vcombine.high %v1234, %v1266
        %v1287 = vcombine.low %v1243, %v1275
        %v1288 = vcombine.high %v1243, %v1275
        %v1289 = vcombine.low %v1250, %v1282
        %v1290 = vcombine.high %v1250, %v1282
        %v1291 = vcombine.low %v277, %v299
        %v1292 = vcombine.high %v277, %v299
        %v1294 = vunpack.c.l.s4 1983009808
        %v1295 = vunpack.c.0.s8 %v1294
        %v1296 = vlaneseq
        %v1297 = vshrl.u32 %v1296, 7
        %v1298 = vsub.s32 %v1295, %v1297
        %v1299 = vrot.slane %v1291, %v1298
        %v1301 = vunpack.c.l.s4 1983009808
        %v1302 = vunpack.c.0.s8 %v1301
        %v1303 = vlaneseq
        %v1304 = vshrl.u32 %v1303, 7
        %v1305 = vsub.s32 %v1302, %v1304
        %v1306 = vrot.slane %v1292, %v1305
        %v1307 = vcombine.low %v288, %v310
        %v1308 = vcombine.high %v288, %v310
        %v1310 = vunpack.c.l.s4 1983009808
        %v1311 = vunpack.c.0.s8 %v1310
        %v1312 = vlaneseq
        %v1313 = vshrl.u32 %v1312, 7
        %v1314 = vsub.s32 %v1311, %v1313
        %v1315 = vrot.slane %v1307, %v1314
        %v1317 = vunpack.c.l.s4 1983009808
        %v1318 = vunpack.c.0.s8 %v1317
        %v1319 = vlaneseq
        %v1320 = vshrl.u32 %v1319, 7
        %v1321 = vsub.s32 %v1318, %v1320
        %v1322 = vrot.slane %v1308, %v1321
        %v1323 = vcombine.low %v321, %v343
        %v1324 = vcombine.high %v321, %v343
        %v1326 = vunpack.c.l.s4 1983009808
        %v1327 = vunpack.c.0.s8 %v1326
        %v1328 = vlaneseq
        %v1329 = vshrl.u32 %v1328, 7
        %v1330 = vsub.s32 %v1327, %v1329
        %v1331 = vrot.slane %v1323, %v1330
        %v1333 = vunpack.c.l.s4 1983009808
        %v1334 = vunpack.c.0.s8 %v1333
        %v1335 = vlaneseq
        %v1336 = vshrl.u32 %v1335, 7
        %v1337 = vsub.s32 %v1334, %v1336
        %v1338 = vrot.slane %v1324, %v1337
        %v1339 = vcombine.low %v332, %v354
        %v1340 = vcombine.high %v332, %v354
        %v1342 = vunpack.c.l.s4 1983009808
        %v1343 = vunpack.c.0.s8 %v1342
        %v1344 = vlaneseq
        %v1345 = vshrl.u32 %v1344, 7
        %v1346 = vsub.s32 %v1343, %v1345
        %v1347 = vrot.slane %v1339, %v1346
        %v1349 = vunpack.c.l.s4 1983009808
        %v1350 = vunpack.c.0.s8 %v1349
        %v1351 = vlaneseq
        %v1352 = vshrl.u32 %v1351, 7
        %v1353 = vsub.s32 %v1350, %v1352
        %v1354 = vrot.slane %v1340, %v1353
        %v1355 = vcombine.low %v1299, %v1315
        %v1356 = vcombine.high %v1299, %v1315
        %v1358 = vunpack.c.l.s4 1934713408
        %v1359 = vunpack.c.0.s8 %v1358
        %v1360 = vlaneseq
        %v1361 = vshrl.u32 %v1360, 7
        %v1362 = vsub.s32 %v1359, %v1361
        %v1363 = vrot.slane %v1355, %v1362
        %v1365 = vunpack.c.l.s4 1934713408
        %v1366 = vunpack.c.0.s8 %v1365
        %v1367 = vlaneseq
        %v1368 = vshrl.u32 %v1367, 7
        %v1369 = vsub.s32 %v1366, %v1368
        %v1370 = vrot.slane %v1356, %v1369
        %v1371 = vcombine.low %v1306, %v1322
        %v1372 = vcombine.high %v1306, %v1322
        %v1374 = vunpack.c.l.s4 1934713408
        %v1375 = vunpack.c.0.s8 %v1374
        %v1376 = vlaneseq
        %v1377 = vshrl.u32 %v1376, 7
        %v1378 = vsub.s32 %v1375, %v1377
        %v1379 = vrot.slane %v1371, %v1378
        %v1381 = vunpack.c.l.s4 1934713408
        %v1382 = vunpack.c.0.s8 %v1381
        %v1383 = vlaneseq
        %v1384 = vshrl.u32 %v1383, 7
        %v1385 = vsub.s32 %v1382, %v1384
        %v1386 = vrot.slane %v1372, %v1385
        %v1387 = vcombine.low %v1331, %v1347
        %v1388 = vcombine.high %v1331, %v1347
        %v1390 = vunpack.c.l.s4 1934713408
        %v1391 = vunpack.c.0.s8 %v1390
        %v1392 = vlaneseq
        %v1393 = vshrl.u32 %v1392, 7
        %v1394 = vsub.s32 %v1391, %v1393
        %v1395 = vrot.slane %v1387, %v1394
        %v1397 = vunpack.c.l.s4 1934713408
        %v1398 = vunpack.c.0.s8 %v1397
        %v1399 = vlaneseq
        %v1400 = vshrl.u32 %v1399, 7
        %v1401 = vsub.s32 %v1398, %v1400
        %v1402 = vrot.slane %v1388, %v1401
        %v1403 = vcombine.low %v1338, %v1354
        %v1404 = vcombine.high %v1338, %v1354
        %v1406 = vunpack.c.l.s4 1934713408
        %v1407 = vunpack.c.0.s8 %v1406
        %v1408 = vlaneseq
        %v1409 = vshrl.u32 %v1408, 7
        %v1410 = vsub.s32 %v1407, %v1409
        %v1411 = vrot.slane %v1403, %v1410
        %v1413 = vunpack.c.l.s4 1934713408
        %v1414 = vunpack.c.0.s8 %v1413
        %v1415 = vlaneseq
        %v1416 = vshrl.u32 %v1415, 7
        %v1417 = vsub.s32 %v1414, %v1416
        %v1418 = vrot.slane %v1404, %v1417
        %v1419 = vcombine.low %v1363, %v1395
        %v1420 = vcombine.high %v1363, %v1395
        %v1421 = vcombine.low %v1370, %v1402
        %v1422 = vcombine.high %v1370, %v1402
        %v1423 = vcombine.low %v1379, %v1411
        %v1424 = vcombine.high %v1379, %v1411
        %v1425 = vcombine.low %v1386, %v1418
        %v1426 = vcombine.high %v1386, %v1418
        %v1427 = vcombine.low %v361, %v383
        %v1428 = vcombine.high %v361, %v383
        %v1430 = vunpack.c.l.s4 1983009808
        %v1431 = vunpack.c.0.s8 %v1430
        %v1432 = vlaneseq
        %v1433 = vshrl.u32 %v1432, 7
        %v1434 = vsub.s32 %v1431, %v1433
        %v1435 = vrot.slane %v1427, %v1434
        %v1437 = vunpack.c.l.s4 1983009808
        %v1438 = vunpack.c.0.s8 %v1437
        %v1439 = vlaneseq
        %v1440 = vshrl.u32 %v1439, 7
        %v1441 = vsub.s32 %v1438, %v1440
        %v1442 = vrot.slane %v1428, %v1441
        %v1443 = vcombine.low %v372, %v394
        %v1444 = vcombine.high %v372, %v394
        %v1446 = vunpack.c.l.s4 1983009808
        %v1447 = vunpack.c.0.s8 %v1446
        %v1448 = vlaneseq
        %v1449 = vshrl.u32 %v1448, 7
        %v1450 = vsub.s32 %v1447, %v1449
        %v1451 = vrot.slane %v1443, %v1450
        %v1453 = vunpack.c.l.s4 1983009808
        %v1454 = vunpack.c.0.s8 %v1453
        %v1455 = vlaneseq
        %v1456 = vshrl.u32 %v1455, 7
        %v1457 = vsub.s32 %v1454, %v1456
        %v1458 = vrot.slane %v1444, %v1457
        %v1459 = vcombine.low %v405, %v427
        %v1460 = vcombine.high %v405, %v427
        %v1462 = vunpack.c.l.s4 1983009808
        %v1463 = vunpack.c.0.s8 %v1462
        %v1464 = vlaneseq
        %v1465 = vshrl.u32 %v1464, 7
        %v1466 = vsub.s32 %v1463, %v1465
        %v1467 = vrot.slane %v1459, %v1466
        %v1469 = vunpack.c.l.s4 1983009808
        %v1470 = vunpack.c.0.s8 %v1469
        %v1471 = vlaneseq
        %v1472 = vshrl.u32 %v1471, 7
        %v1473 = vsub.s32 %v1470, %v1472
        %v1474 = vrot.slane %v1460, %v1473
        %v1475 = vcombine.low %v416, %v438
        %v1476 = vcombine.high %v416, %v438
        %v1478 = vunpack.c.l.s4 1983009808
        %v1479 = vunpack.c.0.s8 %v1478
        %v1480 = vlaneseq
        %v1481 = vshrl.u32 %v1480, 7
        %v1482 = vsub.s32 %v1479, %v1481
        %v1483 = vrot.slane %v1475, %v1482
        %v1485 = vunpack.c.l.s4 1983009808
        %v1486 = vunpack.c.0.s8 %v1485
        %v1487 = vlaneseq
        %v1488 = vshrl.u32 %v1487, 7
        %v1489 = vsub.s32 %v1486, %v1488
        %v1490 = vrot.slane %v1476, %v1489
        %v1491 = vcombine.low %v1435, %v1451
        %v1492 = vcombine.high %v1435, %v1451
        %v1494 = vunpack.c.l.s4 1934713408
        %v1495 = vunpack.c.0.s8 %v1494
        %v1496 = vlaneseq
        %v1497 = vshrl.u32 %v1496, 7
        %v1498 = vsub.s32 %v1495, %v1497
        %v1499 = vrot.slane %v1491, %v1498
        %v1501 = vunpack.c.l.s4 1934713408
        %v1502 = vunpack.c.0.s8 %v1501
        %v1503 = vlaneseq
        %v1504 = vshrl.u32 %v1503, 7
        %v1505 = vsub.s32 %v1502, %v1504
        %v1506 = vrot.slane %v1492, %v1505
        %v1507 = vcombine.low %v1442, %v1458
        %v1508 = vcombine.high %v1442, %v1458
        %v1510 = vunpack.c.l.s4 1934713408
        %v1511 = vunpack.c.0.s8 %v1510
        %v1512 = vlaneseq
        %v1513 = vshrl.u32 %v1512, 7
        %v1514 = vsub.s32 %v1511, %v1513
        %v1515 = vrot.slane %v1507, %v1514
        %v1517 = vunpack.c.l.s4 1934713408
        %v1518 = vunpack.c.0.s8 %v1517
        %v1519 = vlaneseq
        %v1520 = vshrl.u32 %v1519, 7
        %v1521 = vsub.s32 %v1518, %v1520
        %v1522 = vrot.slane %v1508, %v1521
        %v1523 = vcombine.low %v1467, %v1483
        %v1524 = vcombine.high %v1467, %v1483
        %v1526 = vunpack.c.l.s4 1934713408
        %v1527 = vunpack.c.0.s8 %v1526
        %v1528 = vlaneseq
        %v1529 = vshrl.u32 %v1528, 7
        %v1530 = vsub.s32 %v1527, %v1529
        %v1531 = vrot.slane %v1523, %v1530
        %v1533 = vunpack.c.l.s4 1934713408
        %v1534 = vunpack.c.0.s8 %v1533
        %v1535 = vlaneseq
        %v1536 = vshrl.u32 %v1535, 7
        %v1537 = vsub.s32 %v1534, %v1536
        %v1538 = vrot.slane %v1524, %v1537
        %v1539 = vcombine.low %v1474, %v1490
        %v1540 = vcombine.high %v1474, %v1490
        %v1542 = vunpack.c.l.s4 1934713408
        %v1543 = vunpack.c.0.s8 %v1542
        %v1544 = vlaneseq
        %v1545 = vshrl.u32 %v1544, 7
        %v1546 = vsub.s32 %v1543, %v1545
        %v1547 = vrot.slane %v1539, %v1546
        %v1549 = vunpack.c.l.s4 1934713408
        %v1550 = vunpack.c.0.s8 %v1549
        %v1551 = vlaneseq
        %v1552 = vshrl.u32 %v1551, 7
        %v1553 = vsub.s32 %v1550, %v1552
        %v1554 = vrot.slane %v1540, %v1553
        %v1555 = vcombine.low %v1499, %v1531
        %v1556 = vcombine.high %v1499, %v1531
        %v1557 = vcombine.low %v1506, %v1538
        %v1558 = vcombine.high %v1506, %v1538
        %v1559 = vcombine.low %v1515, %v1547
        %v1560 = vcombine.high %v1515, %v1547
        %v1561 = vcombine.low %v1522, %v1554
        %v1562 = vcombine.high %v1522, %v1554
        %v1563 = vcombine.low %v449, %v471
        %v1564 = vcombine.high %v449, %v471
        %v1566 = vunpack.c.l.s4 1983009808
        %v1567 = vunpack.c.0.s8 %v1566
        %v1568 = vlaneseq
        %v1569 = vshrl.u32 %v1568, 7
        %v1570 = vsub.s32 %v1567, %v1569
        %v1571 = vrot.slane %v1563, %v1570
        %v1573 = vunpack.c.l.s4 1983009808
        %v1574 = vunpack.c.0.s8 %v1573
        %v1575 = vlaneseq
        %v1576 = vshrl.u32 %v1575, 7
        %v1577 = vsub.s32 %v1574, %v1576
        %v1578 = vrot.slane %v1564, %v1577
        %v1579 = vcombine.low %v460, %v482
        %v1580 = vcombine.high %v460, %v482
        %v1582 = vunpack.c.l.s4 1983009808
        %v1583 = vunpack.c.0.s8 %v1582
        %v1584 = vlaneseq
        %v1585 = vshrl.u32 %v1584, 7
        %v1586 = vsub.s32 %v1583, %v1585
        %v1587 = vrot.slane %v1579, %v1586
        %v1589 = vunpack.c.l.s4 1983009808
        %v1590 = vunpack.c.0.s8 %v1589
        %v1591 = vlaneseq
        %v1592 = vshrl.u32 %v1591, 7
        %v1593 = vsub.s32 %v1590, %v1592
        %v1594 = vrot.slane %v1580, %v1593
        %v1595 = vcombine.low %v493, %v515
        %v1596 = vcombine.high %v493, %v515
        %v1598 = vunpack.c.l.s4 1983009808
        %v1599 = vunpack.c.0.s8 %v1598
        %v1600 = vlaneseq
        %v1601 = vshrl.u32 %v1600, 7
        %v1602 = vsub.s32 %v1599, %v1601
        %v1603 = vrot.slane %v1595, %v1602
        %v1605 = vunpack.c.l.s4 1983009808
        %v1606 = vunpack.c.0.s8 %v1605
        %v1607 = vlaneseq
        %v1608 = vshrl.u32 %v1607, 7
        %v1609 = vsub.s32 %v1606, %v1608
        %v1610 = vrot.slane %v1596, %v1609
        %v1611 = vcombine.low %v504, %v526
        %v1612 = vcombine.high %v504, %v526
        %v1614 = vunpack.c.l.s4 1983009808
        %v1615 = vunpack.c.0.s8 %v1614
        %v1616 = vlaneseq
        %v1617 = vshrl.u32 %v1616, 7
        %v1618 = vsub.s32 %v1615, %v1617
        %v1619 = vrot.slane %v1611, %v1618
        %v1621 = vunpack.c.l.s4 1983009808
        %v1622 = vunpack.c.0.s8 %v1621
        %v1623 = vlaneseq
        %v1624 = vshrl.u32 %v1623, 7
        %v1625 = vsub.s32 %v1622, %v1624
        %v1626 = vrot.slane %v1612, %v1625
        %v1627 = vcombine.low %v1571, %v1587
        %v1628 = vcombine.high %v1571, %v1587
        %v1630 = vunpack.c.l.s4 1934713408
        %v1631 = vunpack.c.0.s8 %v1630
        %v1632 = vlaneseq
        %v1633 = vshrl.u32 %v1632, 7
        %v1634 = vsub.s32 %v1631, %v1633
        %v1635 = vrot.slane %v1627, %v1634
        %v1637 = vunpack.c.l.s4 1934713408
        %v1638 = vunpack.c.0.s8 %v1637
        %v1639 = vlaneseq
        %v1640 = vshrl.u32 %v1639, 7
        %v1641 = vsub.s32 %v1638, %v1640
        %v1642 = vrot.slane %v1628, %v1641
        %v1643 = vcombine.low %v1578, %v1594
        %v1644 = vcombine.high %v1578, %v1594
        %v1646 = vunpack.c.l.s4 1934713408
        %v1647 = vunpack.c.0.s8 %v1646
        %v1648 = vlaneseq
        %v1649 = vshrl.u32 %v1648, 7
        %v1650 = vsub.s32 %v1647, %v1649
        %v1651 = vrot.slane %v1643, %v1650
        %v1653 = vunpack.c.l.s4 1934713408
        %v1654 = vunpack.c.0.s8 %v1653
        %v1655 = vlaneseq
        %v1656 = vshrl.u32 %v1655, 7
        %v1657 = vsub.s32 %v1654, %v1656
        %v1658 = vrot.slane %v1644, %v1657
        %v1659 = vcombine.low %v1603, %v1619
        %v1660 = vcombine.high %v1603, %v1619
        %v1662 = vunpack.c.l.s4 1934713408
        %v1663 = vunpack.c.0.s8 %v1662
        %v1664 = vlaneseq
        %v1665 = vshrl.u32 %v1664, 7
        %v1666 = vsub.s32 %v1663, %v1665
        %v1667 = vrot.slane %v1659, %v1666
        %v1669 = vunpack.c.l.s4 1934713408
        %v1670 = vunpack.c.0.s8 %v1669
        %v1671 = vlaneseq
        %v1672 = vshrl.u32 %v1671, 7
        %v1673 = vsub.s32 %v1670, %v1672
        %v1674 = vrot.slane %v1660, %v1673
        %v1675 = vcombine.low %v1610, %v1626
        %v1676 = vcombine.high %v1610, %v1626
        %v1678 = vunpack.c.l.s4 1934713408
        %v1679 = vunpack.c.0.s8 %v1678
        %v1680 = vlaneseq
        %v1681 = vshrl.u32 %v1680, 7
        %v1682 = vsub.s32 %v1679, %v1681
        %v1683 = vrot.slane %v1675, %v1682
        %v1685 = vunpack.c.l.s4 1934713408
        %v1686 = vunpack.c.0.s8 %v1685
        %v1687 = vlaneseq
        %v1688 = vshrl.u32 %v1687, 7
        %v1689 = vsub.s32 %v1686, %v1688
        %v1690 = vrot.slane %v1676, %v1689
        %v1691 = vcombine.low %v1635, %v1667
        %v1692 = vcombine.high %v1635, %v1667
        %v1693 = vcombine.low %v1642, %v1674
        %v1694 = vcombine.high %v1642, %v1674
        %v1695 = vcombine.low %v1651, %v1683
        %v1696 = vcombine.high %v1651, %v1683
        %v1697 = vcombine.low %v1658, %v1690
        %v1698 = vcombine.high %v1658, %v1690
        %v1699 = vcombine.low %v365, %v387
        %v1700 = vcombine.high %v365, %v387
        %v1702 = vunpack.c.l.s4 1983009808
        %v1703 = vunpack.c.0.s8 %v1702
        %v1704 = vlaneseq
        %v1705 = vshrl.u32 %v1704, 7
        %v1706 = vsub.s32 %v1703, %v1705
        %v1707 = vrot.slane %v1699, %v1706
        %v1709 = vunpack.c.l.s4 1983009808
        %v1710 = vunpack.c.0.s8 %v1709
        %v1711 = vlaneseq
        %v1712 = vshrl.u32 %v1711, 7
        %v1713 = vsub.s32 %v1710, %v1712
        %v1714 = vrot.slane %v1700, %v1713
        %v1715 = vcombine.low %v376, %v398
        %v1716 = vcombine.high %v376, %v398
        %v1718 = vunpack.c.l.s4 1983009808
        %v1719 = vunpack.c.0.s8 %v1718
        %v1720 = vlaneseq
        %v1721 = vshrl.u32 %v1720, 7
        %v1722 = vsub.s32 %v1719, %v1721
        %v1723 = vrot.slane %v1715, %v1722
        %v1725 = vunpack.c.l.s4 1983009808
        %v1726 = vunpack.c.0.s8 %v1725
        %v1727 = vlaneseq
        %v1728 = vshrl.u32 %v1727, 7
        %v1729 = vsub.s32 %v1726, %v1728
        %v1730 = vrot.slane %v1716, %v1729
        %v1731 = vcombine.low %v409, %v431
        %v1732 = vcombine.high %v409, %v431
        %v1734 = vunpack.c.l.s4 1983009808
        %v1735 = vunpack.c.0.s8 %v1734
        %v1736 = vlaneseq
        %v1737 = vshrl.u32 %v1736, 7
        %v1738 = vsub.s32 %v1735, %v1737
        %v1739 = vrot.slane %v1731, %v1738
        %v1741 = vunpack.c.l.s4 1983009808
        %v1742 = vunpack.c.0.s8 %v1741
        %v1743 = vlaneseq
        %v1744 = vshrl.u32 %v1743, 7
        %v1745 = vsub.s32 %v1742, %v1744
        %v1746 = vrot.slane %v1732, %v1745
        %v1747 = vcombine.low %v420, %v442
        %v1748 = vcombine.high %v420, %v442
        %v1750 = vunpack.c.l.s4 1983009808
        %v1751 = vunpack.c.0.s8 %v1750
        %v1752 = vlaneseq
        %v1753 = vshrl.u32 %v1752, 7
        %v1754 = vsub.s32 %v1751, %v1753
        %v1755 = vrot.slane %v1747, %v1754
        %v1757 = vunpack.c.l.s4 1983009808
        %v1758 = vunpack.c.0.s8 %v1757
        %v1759 = vlaneseq
        %v1760 = vshrl.u32 %v1759, 7
        %v1761 = vsub.s32 %v1758, %v1760
        %v1762 = vrot.slane %v1748, %v1761
        %v1763 = vcombine.low %v1707, %v1723
        %v1764 = vcombine.high %v1707, %v1723
        %v1766 = vunpack.c.l.s4 1934713408
        %v1767 = vunpack.c.0.s8 %v1766
        %v1768 = vlaneseq
        %v1769 = vshrl.u32 %v1768, 7
        %v1770 = vsub.s32 %v1767, %v1769
        %v1771 = vrot.slane %v1763, %v1770
        %v1773 = vunpack.c.l.s4 1934713408
        %v1774 = vunpack.c.0.s8 %v1773
        %v1775 = vlaneseq
        %v1776 = vshrl.u32 %v1775, 7
        %v1777 = vsub.s32 %v1774, %v1776
        %v1778 = vrot.slane %v1764, %v1777
        %v1779 = vcombine.low %v1714, %v1730
        %v1780 = vcombine.high %v1714, %v1730
        %v1782 = vunpack.c.l.s4 1934713408
        %v1783 = vunpack.c.0.s8 %v1782
        %v1784 = vlaneseq
        %v1785 = vshrl.u32 %v1784, 7
        %v1786 = vsub.s32 %v1783, %v1785
        %v1787 = vrot.slane %v1779, %v1786
        %v1789 = vunpack.c.l.s4 1934713408
        %v1790 = vunpack.c.0.s8 %v1789
        %v1791 = vlaneseq
        %v1792 = vshrl.u32 %v1791, 7
        %v1793 = vsub.s32 %v1790, %v1792
        %v1794 = vrot.slane %v1780, %v1793
        %v1795 = vcombine.low %v1739, %v1755
        %v1796 = vcombine.high %v1739, %v1755
        %v1798 = vunpack.c.l.s4 1934713408
        %v1799 = vunpack.c.0.s8 %v1798
        %v1800 = vlaneseq
        %v1801 = vshrl.u32 %v1800, 7
        %v1802 = vsub.s32 %v1799, %v1801
        %v1803 = vrot.slane %v1795, %v1802
        %v1805 = vunpack.c.l.s4 1934713408
        %v1806 = vunpack.c.0.s8 %v1805
        %v1807 = vlaneseq
        %v1808 = vshrl.u32 %v1807, 7
        %v1809 = vsub.s32 %v1806, %v1808
        %v1810 = vrot.slane %v1796, %v1809
        %v1811 = vcombine.low %v1746, %v1762
        %v1812 = vcombine.high %v1746, %v1762
        %v1814 = vunpack.c.l.s4 1934713408
        %v1815 = vunpack.c.0.s8 %v1814
        %v1816 = vlaneseq
        %v1817 = vshrl.u32 %v1816, 7
        %v1818 = vsub.s32 %v1815, %v1817
        %v1819 = vrot.slane %v1811, %v1818
        %v1821 = vunpack.c.l.s4 1934713408
        %v1822 = vunpack.c.0.s8 %v1821
        %v1823 = vlaneseq
        %v1824 = vshrl.u32 %v1823, 7
        %v1825 = vsub.s32 %v1822, %v1824
        %v1826 = vrot.slane %v1812, %v1825
        %v1827 = vcombine.low %v1771, %v1803
        %v1828 = vcombine.high %v1771, %v1803
        %v1829 = vcombine.low %v1778, %v1810
        %v1830 = vcombine.high %v1778, %v1810
        %v1831 = vcombine.low %v1787, %v1819
        %v1832 = vcombine.high %v1787, %v1819
        %v1833 = vcombine.low %v1794, %v1826
        %v1834 = vcombine.high %v1794, %v1826
        %v1835 = vcombine.low %v453, %v475
        %v1836 = vcombine.high %v453, %v475
        %v1838 = vunpack.c.l.s4 1983009808
        %v1839 = vunpack.c.0.s8 %v1838
        %v1840 = vlaneseq
        %v1841 = vshrl.u32 %v1840, 7
        %v1842 = vsub.s32 %v1839, %v1841
        %v1843 = vrot.slane %v1835, %v1842
        %v1845 = vunpack.c.l.s4 1983009808
        %v1846 = vunpack.c.0.s8 %v1845
        %v1847 = vlaneseq
        %v1848 = vshrl.u32 %v1847, 7
        %v1849 = vsub.s32 %v1846, %v1848
        %v1850 = vrot.slane %v1836, %v1849
        %v1851 = vcombine.low %v464, %v486
        %v1852 = vcombine.high %v464, %v486
        %v1854 = vunpack.c.l.s4 1983009808
        %v1855 = vunpack.c.0.s8 %v1854
        %v1856 = vlaneseq
        %v1857 = vshrl.u32 %v1856, 7
        %v1858 = vsub.s32 %v1855, %v1857
        %v1859 = vrot.slane %v1851, %v1858
        %v1861 = vunpack.c.l.s4 1983009808
        %v1862 = vunpack.c.0.s8 %v1861
        %v1863 = vlaneseq
        %v1864 = vshrl.u32 %v1863, 7
        %v1865 = vsub.s32 %v1862, %v1864
        %v1866 = vrot.slane %v1852, %v1865
        %v1867 = vcombine.low %v497, %v519
        %v1868 = vcombine.high %v497, %v519
        %v1870 = vunpack.c.l.s4 1983009808
        %v1871 = vunpack.c.0.s8 %v1870
        %v1872 = vlaneseq
        %v1873 = vshrl.u32 %v1872, 7
        %v1874 = vsub.s32 %v1871, %v1873
        %v1875 = vrot.slane %v1867, %v1874
        %v1877 = vunpack.c.l.s4 1983009808
        %v1878 = vunpack.c.0.s8 %v1877
        %v1879 = vlaneseq
        %v1880 = vshrl.u32 %v1879, 7
        %v1881 = vsub.s32 %v1878, %v1880
        %v1882 = vrot.slane %v1868, %v1881
        %v1883 = vcombine.low %v508, %v530
        %v1884 = vcombine.high %v508, %v530
        %v1886 = vunpack.c.l.s4 1983009808
        %v1887 = vunpack.c.0.s8 %v1886
        %v1888 = vlaneseq
        %v1889 = vshrl.u32 %v1888, 7
        %v1890 = vsub.s32 %v1887, %v1889
        %v1891 = vrot.slane %v1883, %v1890
        %v1893 = vunpack.c.l.s4 1983009808
        %v1894 = vunpack.c.0.s8 %v1893
        %v1895 = vlaneseq
        %v1896 = vshrl.u32 %v1895, 7
        %v1897 = vsub.s32 %v1894, %v1896
        %v1898 = vrot.slane %v1884, %v1897
        %v1899 = vcombine.low %v1843, %v1859
        %v1900 = vcombine.high %v1843, %v1859
        %v1902 = vunpack.c.l.s4 1934713408
        %v1903 = vunpack.c.0.s8 %v1902
        %v1904 = vlaneseq
        %v1905 = vshrl.u32 %v1904, 7
        %v1906 = vsub.s32 %v1903, %v1905
        %v1907 = vrot.slane %v1899, %v1906
        %v1909 = vunpack.c.l.s4 1934713408
        %v1910 = vunpack.c.0.s8 %v1909
        %v1911 = vlaneseq
        %v1912 = vshrl.u32 %v1911, 7
        %v1913 = vsub.s32 %v1910, %v1912
        %v1914 = vrot.slane %v1900, %v1913
        %v1915 = vcombine.low %v1850, %v1866
        %v1916 = vcombine.high %v1850, %v1866
        %v1918 = vunpack.c.l.s4 1934713408
        %v1919 = vunpack.c.0.s8 %v1918
        %v1920 = vlaneseq
        %v1921 = vshrl.u32 %v1920, 7
        %v1922 = vsub.s32 %v1919, %v1921
        %v1923 = vrot.slane %v1915, %v1922
        %v1925 = vunpack.c.l.s4 1934713408
        %v1926 = vunpack.c.0.s8 %v1925
        %v1927 = vlaneseq
        %v1928 = vshrl.u32 %v1927, 7
        %v1929 = vsub.s32 %v1926, %v1928
        %v1930 = vrot.slane %v1916, %v1929
        %v1931 = vcombine.low %v1875, %v1891
        %v1932 = vcombine.high %v1875, %v1891
        %v1934 = vunpack.c.l.s4 1934713408
        %v1935 = vunpack.c.0.s8 %v1934
        %v1936 = vlaneseq
        %v1937 = vshrl.u32 %v1936, 7
        %v1938 = vsub.s32 %v1935, %v1937
        %v1939 = vrot.slane %v1931, %v1938
        %v1941 = vunpack.c.l.s4 1934713408
        %v1942 = vunpack.c.0.s8 %v1941
        %v1943 = vlaneseq
        %v1944 = vshrl.u32 %v1943, 7
        %v1945 = vsub.s32 %v1942, %v1944
        %v1946 = vrot.slane %v1932, %v1945
        %v1947 = vcombine.low %v1882, %v1898
        %v1948 = vcombine.high %v1882, %v1898
        %v1950 = vunpack.c.l.s4 1934713408
        %v1951 = vunpack.c.0.s8 %v1950
        %v1952 = vlaneseq
        %v1953 = vshrl.u32 %v1952, 7
        %v1954 = vsub.s32 %v1951, %v1953
        %v1955 = vrot.slane %v1947, %v1954
        %v1957 = vunpack.c.l.s4 1934713408
        %v1958 = vunpack.c.0.s8 %v1957
        %v1959 = vlaneseq
        %v1960 = vshrl.u32 %v1959, 7
        %v1961 = vsub.s32 %v1958, %v1960
        %v1962 = vrot.slane %v1948, %v1961
        %v1963 = vcombine.low %v1907, %v1939
        %v1964 = vcombine.high %v1907, %v1939
        %v1965 = vcombine.low %v1914, %v1946
        %v1966 = vcombine.high %v1914, %v1946
        %v1967 = vcombine.low %v1923, %v1955
        %v1968 = vcombine.high %v1923, %v1955
        %v1969 = vcombine.low %v1930, %v1962
        %v1970 = vcombine.high %v1930, %v1962
        %v1971 = vcombine.low %v537, %v559
        %v1972 = vcombine.high %v537, %v559
        %v1974 = vunpack.c.l.s4 1983009808
        %v1975 = vunpack.c.0.s8 %v1974
        %v1976 = vlaneseq
        %v1977 = vshrl.u32 %v1976, 7
        %v1978 = vsub.s32 %v1975, %v1977
        %v1979 = vrot.slane %v1971, %v1978
        %v1981 = vunpack.c.l.s4 1983009808
        %v1982 = vunpack.c.0.s8 %v1981
        %v1983 = vlaneseq
        %v1984 = vshrl.u32 %v1983, 7
        %v1985 = vsub.s32 %v1982, %v1984
        %v1986 = vrot.slane %v1972, %v1985
        %v1987 = vcombine.low %v548, %v570
        %v1988 = vcombine.high %v548, %v570
        %v1990 = vunpack.c.l.s4 1983009808
        %v1991 = vunpack.c.0.s8 %v1990
        %v1992 = vlaneseq
        %v1993 = vshrl.u32 %v1992, 7
        %v1994 = vsub.s32 %v1991, %v1993
        %v1995 = vrot.slane %v1987, %v1994
        %v1997 = vunpack.c.l.s4 1983009808
        %v1998 = vunpack.c.0.s8 %v1997
        %v1999 = vlaneseq
        %v2000 = vshrl.u32 %v1999, 7
        %v2001 = vsub.s32 %v1998, %v2000
        %v2002 = vrot.slane %v1988, %v2001
        %v2003 = vcombine.low %v581, %v603
        %v2004 = vcombine.high %v581, %v603
        %v2006 = vunpack.c.l.s4 1983009808
        %v2007 = vunpack.c.0.s8 %v2006
        %v2008 = vlaneseq
        %v2009 = vshrl.u32 %v2008, 7
        %v2010 = vsub.s32 %v2007, %v2009
        %v2011 = vrot.slane %v2003, %v2010
        %v2013 = vunpack.c.l.s4 1983009808
        %v2014 = vunpack.c.0.s8 %v2013
        %v2015 = vlaneseq
        %v2016 = vshrl.u32 %v2015, 7
        %v2017 = vsub.s32 %v2014, %v2016
        %v2018 = vrot.slane %v2004, %v2017
        %v2019 = vcombine.low %v592, %v614
        %v2020 = vcombine.high %v592, %v614
        %v2022 = vunpack.c.l.s4 1983009808
        %v2023 = vunpack.c.0.s8 %v2022
        %v2024 = vlaneseq
        %v2025 = vshrl.u32 %v2024, 7
        %v2026 = vsub.s32 %v2023, %v2025
        %v2027 = vrot.slane %v2019, %v2026
        %v2029 = vunpack.c.l.s4 1983009808
        %v2030 = vunpack.c.0.s8 %v2029
        %v2031 = vlaneseq
        %v2032 = vshrl.u32 %v2031, 7
        %v2033 = vsub.s32 %v2030, %v2032
        %v2034 = vrot.slane %v2020, %v2033
        %v2035 = vcombine.low %v1979, %v1995
        %v2036 = vcombine.high %v1979, %v1995
        %v2038 = vunpack.c.l.s4 1934713408
        %v2039 = vunpack.c.0.s8 %v2038
        %v2040 = vlaneseq
        %v2041 = vshrl.u32 %v2040, 7
        %v2042 = vsub.s32 %v2039, %v2041
        %v2043 = vrot.slane %v2035, %v2042
        %v2045 = vunpack.c.l.s4 1934713408
        %v2046 = vunpack.c.0.s8 %v2045
        %v2047 = vlaneseq
        %v2048 = vshrl.u32 %v2047, 7
        %v2049 = vsub.s32 %v2046, %v2048
        %v2050 = vrot.slane %v2036, %v2049
        %v2051 = vcombine.low %v1986, %v2002
        %v2052 = vcombine.high %v1986, %v2002
        %v2054 = vunpack.c.l.s4 1934713408
        %v2055 = vunpack.c.0.s8 %v2054
        %v2056 = vlaneseq
        %v2057 = vshrl.u32 %v2056, 7
        %v2058 = vsub.s32 %v2055, %v2057
        %v2059 = vrot.slane %v2051, %v2058
        %v2061 = vunpack.c.l.s4 1934713408
        %v2062 = vunpack.c.0.s8 %v2061
        %v2063 = vlaneseq
        %v2064 = vshrl.u32 %v2063, 7
        %v2065 = vsub.s32 %v2062, %v2064
        %v2066 = vrot.slane %v2052, %v2065
        %v2067 = vcombine.low %v2011, %v2027
        %v2068 = vcombine.high %v2011, %v2027
        %v2070 = vunpack.c.l.s4 1934713408
        %v2071 = vunpack.c.0.s8 %v2070
        %v2072 = vlaneseq
        %v2073 = vshrl.u32 %v2072, 7
        %v2074 = vsub.s32 %v2071, %v2073
        %v2075 = vrot.slane %v2067, %v2074
        %v2077 = vunpack.c.l.s4 1934713408
        %v2078 = vunpack.c.0.s8 %v2077
        %v2079 = vlaneseq
        %v2080 = vshrl.u32 %v2079, 7
        %v2081 = vsub.s32 %v2078, %v2080
        %v2082 = vrot.slane %v2068, %v2081
        %v2083 = vcombine.low %v2018, %v2034
        %v2084 = vcombine.high %v2018, %v2034
        %v2086 = vunpack.c.l.s4 1934713408
        %v2087 = vunpack.c.0.s8 %v2086
        %v2088 = vlaneseq
        %v2089 = vshrl.u32 %v2088, 7
        %v2090 = vsub.s32 %v2087, %v2089
        %v2091 = vrot.slane %v2083, %v2090
        %v2093 = vunpack.c.l.s4 1934713408
        %v2094 = vunpack.c.0.s8 %v2093
        %v2095 = vlaneseq
        %v2096 = vshrl.u32 %v2095, 7
        %v2097 = vsub.s32 %v2094, %v2096
        %v2098 = vrot.slane %v2084, %v2097
        %v2099 = vcombine.low %v2043, %v2075
        %v2100 = vcombine.high %v2043, %v2075
        %v2101 = vcombine.low %v2050, %v2082
        %v2102 = vcombine.high %v2050, %v2082
        %v2103 = vcombine.low %v2059, %v2091
        %v2104 = vcombine.high %v2059, %v2091
        %v2105 = vcombine.low %v2066, %v2098
        %v2106 = vcombine.high %v2066, %v2098
        %v2107 = vcombine.low %v625, %v647
        %v2108 = vcombine.high %v625, %v647
        %v2110 = vunpack.c.l.s4 1983009808
        %v2111 = vunpack.c.0.s8 %v2110
        %v2112 = vlaneseq
        %v2113 = vshrl.u32 %v2112, 7
        %v2114 = vsub.s32 %v2111, %v2113
        %v2115 = vrot.slane %v2107, %v2114
        %v2117 = vunpack.c.l.s4 1983009808
        %v2118 = vunpack.c.0.s8 %v2117
        %v2119 = vlaneseq
        %v2120 = vshrl.u32 %v2119, 7
        %v2121 = vsub.s32 %v2118, %v2120
        %v2122 = vrot.slane %v2108, %v2121
        %v2123 = vcombine.low %v636, %v658
        %v2124 = vcombine.high %v636, %v658
        %v2126 = vunpack.c.l.s4 1983009808
        %v2127 = vunpack.c.0.s8 %v2126
        %v2128 = vlaneseq
        %v2129 = vshrl.u32 %v2128, 7
        %v2130 = vsub.s32 %v2127, %v2129
        %v2131 = vrot.slane %v2123, %v2130
        %v2133 = vunpack.c.l.s4 1983009808
        %v2134 = vunpack.c.0.s8 %v2133
        %v2135 = vlaneseq
        %v2136 = vshrl.u32 %v2135, 7
        %v2137 = vsub.s32 %v2134, %v2136
        %v2138 = vrot.slane %v2124, %v2137
        %v2139 = vcombine.low %v669, %v691
        %v2140 = vcombine.high %v669, %v691
        %v2142 = vunpack.c.l.s4 1983009808
        %v2143 = vunpack.c.0.s8 %v2142
        %v2144 = vlaneseq
        %v2145 = vshrl.u32 %v2144, 7
        %v2146 = vsub.s32 %v2143, %v2145
        %v2147 = vrot.slane %v2139, %v2146
        %v2149 = vunpack.c.l.s4 1983009808
        %v2150 = vunpack.c.0.s8 %v2149
        %v2151 = vlaneseq
        %v2152 = vshrl.u32 %v2151, 7
        %v2153 = vsub.s32 %v2150, %v2152
        %v2154 = vrot.slane %v2140, %v2153
        %v2155 = vcombine.low %v680, %v702
        %v2156 = vcombine.high %v680, %v702
        %v2158 = vunpack.c.l.s4 1983009808
        %v2159 = vunpack.c.0.s8 %v2158
        %v2160 = vlaneseq
        %v2161 = vshrl.u32 %v2160, 7
        %v2162 = vsub.s32 %v2159, %v2161
        %v2163 = vrot.slane %v2155, %v2162
        %v2165 = vunpack.c.l.s4 1983009808
        %v2166 = vunpack.c.0.s8 %v2165
        %v2167 = vlaneseq
        %v2168 = vshrl.u32 %v2167, 7
        %v2169 = vsub.s32 %v2166, %v2168
        %v2170 = vrot.slane %v2156, %v2169
        %v2171 = vcombine.low %v2115, %v2131
        %v2172 = vcombine.high %v2115, %v2131
        %v2174 = vunpack.c.l.s4 1934713408
        %v2175 = vunpack.c.0.s8 %v2174
        %v2176 = vlaneseq
        %v2177 = vshrl.u32 %v2176, 7
        %v2178 = vsub.s32 %v2175, %v2177
        %v2179 = vrot.slane %v2171, %v2178
        %v2181 = vunpack.c.l.s4 1934713408
        %v2182 = vunpack.c.0.s8 %v2181
        %v2183 = vlaneseq
        %v2184 = vshrl.u32 %v2183, 7
        %v2185 = vsub.s32 %v2182, %v2184
        %v2186 = vrot.slane %v2172, %v2185
        %v2187 = vcombine.low %v2122, %v2138
        %v2188 = vcombine.high %v2122, %v2138
        %v2190 = vunpack.c.l.s4 1934713408
        %v2191 = vunpack.c.0.s8 %v2190
        %v2192 = vlaneseq
        %v2193 = vshrl.u32 %v2192, 7
        %v2194 = vsub.s32 %v2191, %v2193
        %v2195 = vrot.slane %v2187, %v2194
        %v2197 = vunpack.c.l.s4 1934713408
        %v2198 = vunpack.c.0.s8 %v2197
        %v2199 = vlaneseq
        %v2200 = vshrl.u32 %v2199, 7
        %v2201 = vsub.s32 %v2198, %v2200
        %v2202 = vrot.slane %v2188, %v2201
        %v2203 = vcombine.low %v2147, %v2163
        %v2204 = vcombine.high %v2147, %v2163
        %v2206 = vunpack.c.l.s4 1934713408
        %v2207 = vunpack.c.0.s8 %v2206
        %v2208 = vlaneseq
        %v2209 = vshrl.u32 %v2208, 7
        %v2210 = vsub.s32 %v2207, %v2209
        %v2211 = vrot.slane %v2203, %v2210
        %v2213 = vunpack.c.l.s4 1934713408
        %v2214 = vunpack.c.0.s8 %v2213
        %v2215 = vlaneseq
        %v2216 = vshrl.u32 %v2215, 7
        %v2217 = vsub.s32 %v2214, %v2216
        %v2218 = vrot.slane %v2204, %v2217
        %v2219 = vcombine.low %v2154, %v2170
        %v2220 = vcombine.high %v2154, %v2170
        %v2222 = vunpack.c.l.s4 1934713408
        %v2223 = vunpack.c.0.s8 %v2222
        %v2224 = vlaneseq
        %v2225 = vshrl.u32 %v2224, 7
        %v2226 = vsub.s32 %v2223, %v2225
        %v2227 = vrot.slane %v2219, %v2226
        %v2229 = vunpack.c.l.s4 1934713408
        %v2230 = vunpack.c.0.s8 %v2229
        %v2231 = vlaneseq
        %v2232 = vshrl.u32 %v2231, 7
        %v2233 = vsub.s32 %v2230, %v2232
        %v2234 = vrot.slane %v2220, %v2233
        %v2235 = vcombine.low %v2179, %v2211
        %v2236 = vcombine.high %v2179, %v2211
        %v2237 = vcombine.low %v2186, %v2218
        %v2238 = vcombine.high %v2186, %v2218
        %v2239 = vcombine.low %v2195, %v2227
        %v2240 = vcombine.high %v2195, %v2227
        %v2241 = vcombine.low %v2202, %v2234
        %v2242 = vcombine.high %v2202, %v2234
        %v2243 = vcombine.low %v541, %v563
        %v2244 = vcombine.high %v541, %v563
        %v2246 = vunpack.c.l.s4 1983009808
        %v2247 = vunpack.c.0.s8 %v2246
        %v2248 = vlaneseq
        %v2249 = vshrl.u32 %v2248, 7
        %v2250 = vsub.s32 %v2247, %v2249
        %v2251 = vrot.slane %v2243, %v2250
        %v2253 = vunpack.c.l.s4 1983009808
        %v2254 = vunpack.c.0.s8 %v2253
        %v2255 = vlaneseq
        %v2256 = vshrl.u32 %v2255, 7
        %v2257 = vsub.s32 %v2254, %v2256
        %v2258 = vrot.slane %v2244, %v2257
        %v2259 = vcombine.low %v552, %v574
        %v2260 = vcombine.high %v552, %v574
        %v2262 = vunpack.c.l.s4 1983009808
        %v2263 = vunpack.c.0.s8 %v2262
        %v2264 = vlaneseq
        %v2265 = vshrl.u32 %v2264, 7
        %v2266 = vsub.s32 %v2263, %v2265
        %v2267 = vrot.slane %v2259, %v2266
        %v2269 = vunpack.c.l.s4 1983009808
        %v2270 = vunpack.c.0.s8 %v2269
        %v2271 = vlaneseq
        %v2272 = vshrl.u32 %v2271, 7
        %v2273 = vsub.s32 %v2270, %v2272
        %v2274 = vrot.slane %v2260, %v2273
        %v2275 = vcombine.low %v585, %v607
        %v2276 = vcombine.high %v585, %v607
        %v2278 = vunpack.c.l.s4 1983009808
        %v2279 = vunpack.c.0.s8 %v2278
        %v2280 = vlaneseq
        %v2281 = vshrl.u32 %v2280, 7
        %v2282 = vsub.s32 %v2279, %v2281
        %v2283 = vrot.slane %v2275, %v2282
        %v2285 = vunpack.c.l.s4 1983009808
        %v2286 = vunpack.c.0.s8 %v2285
        %v2287 = vlaneseq
        %v2288 = vshrl.u32 %v2287, 7
        %v2289 = vsub.s32 %v2286, %v2288
        %v2290 = vrot.slane %v2276, %v2289
        %v2291 = vcombine.low %v596, %v618
        %v2292 = vcombine.high %v596, %v618
        %v2294 = vunpack.c.l.s4 1983009808
        %v2295 = vunpack.c.0.s8 %v2294
        %v2296 = vlaneseq
        %v2297 = vshrl.u32 %v2296, 7
        %v2298 = vsub.s32 %v2295, %v2297
        %v2299 = vrot.slane %v2291, %v2298
        %v2301 = vunpack.c.l.s4 1983009808
        %v2302 = vunpack.c.0.s8 %v2301
        %v2303 = vlaneseq
        %v2304 = vshrl.u32 %v2303, 7
        %v2305 = vsub.s32 %v2302, %v2304
        %v2306 = vrot.slane %v2292, %v2305
        %v2307 = vcombine.low %v2251, %v2267
        %v2308 = vcombine.high %v2251, %v2267
        %v2310 = vunpack.c.l.s4 1934713408
        %v2311 = vunpack.c.0.s8 %v2310
        %v2312 = vlaneseq
        %v2313 = vshrl.u32 %v2312, 7
        %v2314 = vsub.s32 %v2311, %v2313
        %v2315 = vrot.slane %v2307, %v2314
        %v2317 = vunpack.c.l.s4 1934713408
        %v2318 = vunpack.c.0.s8 %v2317
        %v2319 = vlaneseq
        %v2320 = vshrl.u32 %v2319, 7
        %v2321 = vsub.s32 %v2318, %v2320
        %v2322 = vrot.slane %v2308, %v2321
        %v2323 = vcombine.low %v2258, %v2274
        %v2324 = vcombine.high %v2258, %v2274
        %v2326 = vunpack.c.l.s4 1934713408
        %v2327 = vunpack.c.0.s8 %v2326
        %v2328 = vlaneseq
        %v2329 = vshrl.u32 %v2328, 7
        %v2330 = vsub.s32 %v2327, %v2329
        %v2331 = vrot.slane %v2323, %v2330
        %v2333 = vunpack.c.l.s4 1934713408
        %v2334 = vunpack.c.0.s8 %v2333
        %v2335 = vlaneseq
        %v2336 = vshrl.u32 %v2335, 7
        %v2337 = vsub.s32 %v2334, %v2336
        %v2338 = vrot.slane %v2324, %v2337
        %v2339 = vcombine.low %v2283, %v2299
        %v2340 = vcombine.high %v2283, %v2299
        %v2342 = vunpack.c.l.s4 1934713408
        %v2343 = vunpack.c.0.s8 %v2342
        %v2344 = vlaneseq
        %v2345 = vshrl.u32 %v2344, 7
        %v2346 = vsub.s32 %v2343, %v2345
        %v2347 = vrot.slane %v2339, %v2346
        %v2349 = vunpack.c.l.s4 1934713408
        %v2350 = vunpack.c.0.s8 %v2349
        %v2351 = vlaneseq
        %v2352 = vshrl.u32 %v2351, 7
        %v2353 = vsub.s32 %v2350, %v2352
        %v2354 = vrot.slane %v2340, %v2353
        %v2355 = vcombine.low %v2290, %v2306
        %v2356 = vcombine.high %v2290, %v2306
        %v2358 = vunpack.c.l.s4 1934713408
        %v2359 = vunpack.c.0.s8 %v2358
        %v2360 = vlaneseq
        %v2361 = vshrl.u32 %v2360, 7
        %v2362 = vsub.s32 %v2359, %v2361
        %v2363 = vrot.slane %v2355, %v2362
        %v2365 = vunpack.c.l.s4 1934713408
        %v2366 = vunpack.c.0.s8 %v2365
        %v2367 = vlaneseq
        %v2368 = vshrl.u32 %v2367, 7
        %v2369 = vsub.s32 %v2366, %v2368
        %v2370 = vrot.slane %v2356, %v2369
        %v2371 = vcombine.low %v2315, %v2347
        %v2372 = vcombine.high %v2315, %v2347
        %v2373 = vcombine.low %v2322, %v2354
        %v2374 = vcombine.high %v2322, %v2354
        %v2375 = vcombine.low %v2331, %v2363
        %v2376 = vcombine.high %v2331, %v2363
        %v2377 = vcombine.low %v2338, %v2370
        %v2378 = vcombine.high %v2338, %v2370
        %v2379 = vcombine.low %v629, %v651
        %v2380 = vcombine.high %v629, %v651
        %v2382 = vunpack.c.l.s4 1983009808
        %v2383 = vunpack.c.0.s8 %v2382
        %v2384 = vlaneseq
        %v2385 = vshrl.u32 %v2384, 7
        %v2386 = vsub.s32 %v2383, %v2385
        %v2387 = vrot.slane %v2379, %v2386
        %v2389 = vunpack.c.l.s4 1983009808
        %v2390 = vunpack.c.0.s8 %v2389
        %v2391 = vlaneseq
        %v2392 = vshrl.u32 %v2391, 7
        %v2393 = vsub.s32 %v2390, %v2392
        %v2394 = vrot.slane %v2380, %v2393
        %v2395 = vcombine.low %v640, %v662
        %v2396 = vcombine.high %v640, %v662
        %v2398 = vunpack.c.l.s4 1983009808
        %v2399 = vunpack.c.0.s8 %v2398
        %v2400 = vlaneseq
        %v2401 = vshrl.u32 %v2400, 7
        %v2402 = vsub.s32 %v2399, %v2401
        %v2403 = vrot.slane %v2395, %v2402
        %v2405 = vunpack.c.l.s4 1983009808
        %v2406 = vunpack.c.0.s8 %v2405
        %v2407 = vlaneseq
        %v2408 = vshrl.u32 %v2407, 7
        %v2409 = vsub.s32 %v2406, %v2408
        %v2410 = vrot.slane %v2396, %v2409
        %v2411 = vcombine.low %v673, %v695
        %v2412 = vcombine.high %v673, %v695
        %v2414 = vunpack.c.l.s4 1983009808
        %v2415 = vunpack.c.0.s8 %v2414
        %v2416 = vlaneseq
        %v2417 = vshrl.u32 %v2416, 7
        %v2418 = vsub.s32 %v2415, %v2417
        %v2419 = vrot.slane %v2411, %v2418
        %v2421 = vunpack.c.l.s4 1983009808
        %v2422 = vunpack.c.0.s8 %v2421
        %v2423 = vlaneseq
        %v2424 = vshrl.u32 %v2423, 7
        %v2425 = vsub.s32 %v2422, %v2424
        %v2426 = vrot.slane %v2412, %v2425
        %v2427 = vcombine.low %v684, %v706
        %v2428 = vcombine.high %v684, %v706
        %v2430 = vunpack.c.l.s4 1983009808
        %v2431 = vunpack.c.0.s8 %v2430
        %v2432 = vlaneseq
        %v2433 = vshrl.u32 %v2432, 7
        %v2434 = vsub.s32 %v2431, %v2433
        %v2435 = vrot.slane %v2427, %v2434
        %v2437 = vunpack.c.l.s4 1983009808
        %v2438 = vunpack.c.0.s8 %v2437
        %v2439 = vlaneseq
        %v2440 = vshrl.u32 %v2439, 7
        %v2441 = vsub.s32 %v2438, %v2440
        %v2442 = vrot.slane %v2428, %v2441
        %v2443 = vcombine.low %v2387, %v2403
        %v2444 = vcombine.high %v2387, %v2403
        %v2446 = vunpack.c.l.s4 1934713408
        %v2447 = vunpack.c.0.s8 %v2446
        %v2448 = vlaneseq
        %v2449 = vshrl.u32 %v2448, 7
        %v2450 = vsub.s32 %v2447, %v2449
        %v2451 = vrot.slane %v2443, %v2450
        %v2453 = vunpack.c.l.s4 1934713408
        %v2454 = vunpack.c.0.s8 %v2453
        %v2455 = vlaneseq
        %v2456 = vshrl.u32 %v2455, 7
        %v2457 = vsub.s32 %v2454, %v2456
        %v2458 = vrot.slane %v2444, %v2457
        %v2459 = vcombine.low %v2394, %v2410
        %v2460 = vcombine.high %v2394, %v2410
        %v2462 = vunpack.c.l.s4 1934713408
        %v2463 = vunpack.c.0.s8 %v2462
        %v2464 = vlaneseq
        %v2465 = vshrl.u32 %v2464, 7
        %v2466 = vsub.s32 %v2463, %v2465
        %v2467 = vrot.slane %v2459, %v2466
        %v2469 = vunpack.c.l.s4 1934713408
        %v2470 = vunpack.c.0.s8 %v2469
        %v2471 = vlaneseq
        %v2472 = vshrl.u32 %v2471, 7
        %v2473 = vsub.s32 %v2470, %v2472
        %v2474 = vrot.slane %v2460, %v2473
        %v2475 = vcombine.low %v2419, %v2435
        %v2476 = vcombine.high %v2419, %v2435
        %v2478 = vunpack.c.l.s4 1934713408
        %v2479 = vunpack.c.0.s8 %v2478
        %v2480 = vlaneseq
        %v2481 = vshrl.u32 %v2480, 7
        %v2482 = vsub.s32 %v2479, %v2481
        %v2483 = vrot.slane %v2475, %v2482
        %v2485 = vunpack.c.l.s4 1934713408
        %v2486 = vunpack.c.0.s8 %v2485
        %v2487 = vlaneseq
        %v2488 = vshrl.u32 %v2487, 7
        %v2489 = vsub.s32 %v2486, %v2488
        %v2490 = vrot.slane %v2476, %v2489
        %v2491 = vcombine.low %v2426, %v2442
        %v2492 = vcombine.high %v2426, %v2442
        %v2494 = vunpack.c.l.s4 1934713408
        %v2495 = vunpack.c.0.s8 %v2494
        %v2496 = vlaneseq
        %v2497 = vshrl.u32 %v2496, 7
        %v2498 = vsub.s32 %v2495, %v2497
        %v2499 = vrot.slane %v2491, %v2498
        %v2501 = vunpack.c.l.s4 1934713408
        %v2502 = vunpack.c.0.s8 %v2501
        %v2503 = vlaneseq
        %v2504 = vshrl.u32 %v2503, 7
        %v2505 = vsub.s32 %v2502, %v2504
        %v2506 = vrot.slane %v2492, %v2505
        %v2507 = vcombine.low %v2451, %v2483
        %v2508 = vcombine.high %v2451, %v2483
        %v2509 = vcombine.low %v2458, %v2490
        %v2510 = vcombine.high %v2458, %v2490
        %v2511 = vcombine.low %v2467, %v2499
        %v2512 = vcombine.high %v2467, %v2499
        %v2513 = vcombine.low %v2474, %v2506
        %v2514 = vcombine.high %v2474, %v2506
        %v2515 = vcombine.low %v713, %v735
        %v2516 = vcombine.high %v713, %v735
        %v2518 = vunpack.c.l.s4 1983009808
        %v2519 = vunpack.c.0.s8 %v2518
        %v2520 = vlaneseq
        %v2521 = vshrl.u32 %v2520, 7
        %v2522 = vsub.s32 %v2519, %v2521
        %v2523 = vrot.slane %v2515, %v2522
        %v2525 = vunpack.c.l.s4 1983009808
        %v2526 = vunpack.c.0.s8 %v2525
        %v2527 = vlaneseq
        %v2528 = vshrl.u32 %v2527, 7
        %v2529 = vsub.s32 %v2526, %v2528
        %v2530 = vrot.slane %v2516, %v2529
        %v2531 = vcombine.low %v724, %v746
        %v2532 = vcombine.high %v724, %v746
        %v2534 = vunpack.c.l.s4 1983009808
        %v2535 = vunpack.c.0.s8 %v2534
        %v2536 = vlaneseq
        %v2537 = vshrl.u32 %v2536, 7
        %v2538 = vsub.s32 %v2535, %v2537
        %v2539 = vrot.slane %v2531, %v2538
        %v2541 = vunpack.c.l.s4 1983009808
        %v2542 = vunpack.c.0.s8 %v2541
        %v2543 = vlaneseq
        %v2544 = vshrl.u32 %v2543, 7
        %v2545 = vsub.s32 %v2542, %v2544
        %v2546 = vrot.slane %v2532, %v2545
        %v2547 = vcombine.low %v757, %v779
        %v2548 = vcombine.high %v757, %v779
        %v2550 = vunpack.c.l.s4 1983009808
        %v2551 = vunpack.c.0.s8 %v2550
        %v2552 = vlaneseq
        %v2553 = vshrl.u32 %v2552, 7
        %v2554 = vsub.s32 %v2551, %v2553
        %v2555 = vrot.slane %v2547, %v2554
        %v2557 = vunpack.c.l.s4 1983009808
        %v2558 = vunpack.c.0.s8 %v2557
        %v2559 = vlaneseq
        %v2560 = vshrl.u32 %v2559, 7
        %v2561 = vsub.s32 %v2558, %v2560
        %v2562 = vrot.slane %v2548, %v2561
        %v2563 = vcombine.low %v768, %v790
        %v2564 = vcombine.high %v768, %v790
        %v2566 = vunpack.c.l.s4 1983009808
        %v2567 = vunpack.c.0.s8 %v2566
        %v2568 = vlaneseq
        %v2569 = vshrl.u32 %v2568, 7
        %v2570 = vsub.s32 %v2567, %v2569
        %v2571 = vrot.slane %v2563, %v2570
        %v2573 = vunpack.c.l.s4 1983009808
        %v2574 = vunpack.c.0.s8 %v2573
        %v2575 = vlaneseq
        %v2576 = vshrl.u32 %v2575, 7
        %v2577 = vsub.s32 %v2574, %v2576
        %v2578 = vrot.slane %v2564, %v2577
        %v2579 = vcombine.low %v2523, %v2539
        %v2580 = vcombine.high %v2523, %v2539
        %v2582 = vunpack.c.l.s4 1934713408
        %v2583 = vunpack.c.0.s8 %v2582
        %v2584 = vlaneseq
        %v2585 = vshrl.u32 %v2584, 7
        %v2586 = vsub.s32 %v2583, %v2585
        %v2587 = vrot.slane %v2579, %v2586
        %v2589 = vunpack.c.l.s4 1934713408
        %v2590 = vunpack.c.0.s8 %v2589
        %v2591 = vlaneseq
        %v2592 = vshrl.u32 %v2591, 7
        %v2593 = vsub.s32 %v2590, %v2592
        %v2594 = vrot.slane %v2580, %v2593
        %v2595 = vcombine.low %v2530, %v2546
        %v2596 = vcombine.high %v2530, %v2546
        %v2598 = vunpack.c.l.s4 1934713408
        %v2599 = vunpack.c.0.s8 %v2598
        %v2600 = vlaneseq
        %v2601 = vshrl.u32 %v2600, 7
        %v2602 = vsub.s32 %v2599, %v2601
        %v2603 = vrot.slane %v2595, %v2602
        %v2605 = vunpack.c.l.s4 1934713408
        %v2606 = vunpack.c.0.s8 %v2605
        %v2607 = vlaneseq
        %v2608 = vshrl.u32 %v2607, 7
        %v2609 = vsub.s32 %v2606, %v2608
        %v2610 = vrot.slane %v2596, %v2609
        %v2611 = vcombine.low %v2555, %v2571
        %v2612 = vcombine.high %v2555, %v2571
        %v2614 = vunpack.c.l.s4 1934713408
        %v2615 = vunpack.c.0.s8 %v2614
        %v2616 = vlaneseq
        %v2617 = vshrl.u32 %v2616, 7
        %v2618 = vsub.s32 %v2615, %v2617
        %v2619 = vrot.slane %v2611, %v2618
        %v2621 = vunpack.c.l.s4 1934713408
        %v2622 = vunpack.c.0.s8 %v2621
        %v2623 = vlaneseq
        %v2624 = vshrl.u32 %v2623, 7
        %v2625 = vsub.s32 %v2622, %v2624
        %v2626 = vrot.slane %v2612, %v2625
        %v2627 = vcombine.low %v2562, %v2578
        %v2628 = vcombine.high %v2562, %v2578
        %v2630 = vunpack.c.l.s4 1934713408
        %v2631 = vunpack.c.0.s8 %v2630
        %v2632 = vlaneseq
        %v2633 = vshrl.u32 %v2632, 7
        %v2634 = vsub.s32 %v2631, %v2633
        %v2635 = vrot.slane %v2627, %v2634
        %v2637 = vunpack.c.l.s4 1934713408
        %v2638 = vunpack.c.0.s8 %v2637
        %v2639 = vlaneseq
        %v2640 = vshrl.u32 %v2639, 7
        %v2641 = vsub.s32 %v2638, %v2640
        %v2642 = vrot.slane %v2628, %v2641
        %v2643 = vcombine.low %v2587, %v2619
        %v2644 = vcombine.high %v2587, %v2619
        %v2645 = vcombine.low %v2594, %v2626
        %v2646 = vcombine.high %v2594, %v2626
        %v2647 = vcombine.low %v2603, %v2635
        %v2648 = vcombine.high %v2603, %v2635
        %v2649 = vcombine.low %v2610, %v2642
        %v2650 = vcombine.high %v2610, %v2642
        %v2651 = vcombine.low %v801, %v823
        %v2652 = vcombine.high %v801, %v823
        %v2654 = vunpack.c.l.s4 1983009808
        %v2655 = vunpack.c.0.s8 %v2654
        %v2656 = vlaneseq
        %v2657 = vshrl.u32 %v2656, 7
        %v2658 = vsub.s32 %v2655, %v2657
        %v2659 = vrot.slane %v2651, %v2658
        %v2661 = vunpack.c.l.s4 1983009808
        %v2662 = vunpack.c.0.s8 %v2661
        %v2663 = vlaneseq
        %v2664 = vshrl.u32 %v2663, 7
        %v2665 = vsub.s32 %v2662, %v2664
        %v2666 = vrot.slane %v2652, %v2665
        %v2667 = vcombine.low %v812, %v834
        %v2668 = vcombine.high %v812, %v834
        %v2670 = vunpack.c.l.s4 1983009808
        %v2671 = vunpack.c.0.s8 %v2670
        %v2672 = vlaneseq
        %v2673 = vshrl.u32 %v2672, 7
        %v2674 = vsub.s32 %v2671, %v2673
        %v2675 = vrot.slane %v2667, %v2674
        %v2677 = vunpack.c.l.s4 1983009808
        %v2678 = vunpack.c.0.s8 %v2677
        %v2679 = vlaneseq
        %v2680 = vshrl.u32 %v2679, 7
        %v2681 = vsub.s32 %v2678, %v2680
        %v2682 = vrot.slane %v2668, %v2681
        %v2683 = vcombine.low %v845, %v867
        %v2684 = vcombine.high %v845, %v867
        %v2686 = vunpack.c.l.s4 1983009808
        %v2687 = vunpack.c.0.s8 %v2686
        %v2688 = vlaneseq
        %v2689 = vshrl.u32 %v2688, 7
        %v2690 = vsub.s32 %v2687, %v2689
        %v2691 = vrot.slane %v2683, %v2690
        %v2693 = vunpack.c.l.s4 1983009808
        %v2694 = vunpack.c.0.s8 %v2693
        %v2695 = vlaneseq
        %v2696 = vshrl.u32 %v2695, 7
        %v2697 = vsub.s32 %v2694, %v2696
        %v2698 = vrot.slane %v2684, %v2697
        %v2699 = vcombine.low %v856, %v878
        %v2700 = vcombine.high %v856, %v878
        %v2702 = vunpack.c.l.s4 1983009808
        %v2703 = vunpack.c.0.s8 %v2702
        %v2704 = vlaneseq
        %v2705 = vshrl.u32 %v2704, 7
        %v2706 = vsub.s32 %v2703, %v2705
        %v2707 = vrot.slane %v2699, %v2706
        %v2709 = vunpack.c.l.s4 1983009808
        %v2710 = vunpack.c.0.s8 %v2709
        %v2711 = vlaneseq
        %v2712 = vshrl.u32 %v2711, 7
        %v2713 = vsub.s32 %v2710, %v2712
        %v2714 = vrot.slane %v2700, %v2713
        %v2715 = vcombine.low %v2659, %v2675
        %v2716 = vcombine.high %v2659, %v2675
        %v2718 = vunpack.c.l.s4 1934713408
        %v2719 = vunpack.c.0.s8 %v2718
        %v2720 = vlaneseq
        %v2721 = vshrl.u32 %v2720, 7
        %v2722 = vsub.s32 %v2719, %v2721
        %v2723 = vrot.slane %v2715, %v2722
        %v2725 = vunpack.c.l.s4 1934713408
        %v2726 = vunpack.c.0.s8 %v2725
        %v2727 = vlaneseq
        %v2728 = vshrl.u32 %v2727, 7
        %v2729 = vsub.s32 %v2726, %v2728
        %v2730 = vrot.slane %v2716, %v2729
        %v2731 = vcombine.low %v2666, %v2682
        %v2732 = vcombine.high %v2666, %v2682
        %v2734 = vunpack.c.l.s4 1934713408
        %v2735 = vunpack.c.0.s8 %v2734
        %v2736 = vlaneseq
        %v2737 = vshrl.u32 %v2736, 7
        %v2738 = vsub.s32 %v2735, %v2737
        %v2739 = vrot.slane %v2731, %v2738
        %v2741 = vunpack.c.l.s4 1934713408
        %v2742 = vunpack.c.0.s8 %v2741
        %v2743 = vlaneseq
        %v2744 = vshrl.u32 %v2743, 7
        %v2745 = vsub.s32 %v2742, %v2744
        %v2746 = vrot.slane %v2732, %v2745
        %v2747 = vcombine.low %v2691, %v2707
        %v2748 = vcombine.high %v2691, %v2707
        %v2750 = vunpack.c.l.s4 1934713408
        %v2751 = vunpack.c.0.s8 %v2750
        %v2752 = vlaneseq
        %v2753 = vshrl.u32 %v2752, 7
        %v2754 = vsub.s32 %v2751, %v2753
        %v2755 = vrot.slane %v2747, %v2754
        %v2757 = vunpack.c.l.s4 1934713408
        %v2758 = vunpack.c.0.s8 %v2757
        %v2759 = vlaneseq
        %v2760 = vshrl.u32 %v2759, 7
        %v2761 = vsub.s32 %v2758, %v2760
        %v2762 = vrot.slane %v2748, %v2761
        %v2763 = vcombine.low %v2698, %v2714
        %v2764 = vcombine.high %v2698, %v2714
        %v2766 = vunpack.c.l.s4 1934713408
        %v2767 = vunpack.c.0.s8 %v2766
        %v2768 = vlaneseq
        %v2769 = vshrl.u32 %v2768, 7
        %v2770 = vsub.s32 %v2767, %v2769
        %v2771 = vrot.slane %v2763, %v2770
        %v2773 = vunpack.c.l.s4 1934713408
        %v2774 = vunpack.c.0.s8 %v2773
        %v2775 = vlaneseq
        %v2776 = vshrl.u32 %v2775, 7
        %v2777 = vsub.s32 %v2774, %v2776
        %v2778 = vrot.slane %v2764, %v2777
        %v2779 = vcombine.low %v2723, %v2755
        %v2780 = vcombine.high %v2723, %v2755
        %v2781 = vcombine.low %v2730, %v2762
        %v2782 = vcombine.high %v2730, %v2762
        %v2783 = vcombine.low %v2739, %v2771
        %v2784 = vcombine.high %v2739, %v2771
        %v2785 = vcombine.low %v2746, %v2778
        %v2786 = vcombine.high %v2746, %v2778
        %v2787 = vcombine.low %v717, %v739
        %v2788 = vcombine.high %v717, %v739
        %v2790 = vunpack.c.l.s4 1983009808
        %v2791 = vunpack.c.0.s8 %v2790
        %v2792 = vlaneseq
        %v2793 = vshrl.u32 %v2792, 7
        %v2794 = vsub.s32 %v2791, %v2793
        %v2795 = vrot.slane %v2787, %v2794
        %v2797 = vunpack.c.l.s4 1983009808
        %v2798 = vunpack.c.0.s8 %v2797
        %v2799 = vlaneseq
        %v2800 = vshrl.u32 %v2799, 7
        %v2801 = vsub.s32 %v2798, %v2800
        %v2802 = vrot.slane %v2788, %v2801
        %v2803 = vcombine.low %v728, %v750
        %v2804 = vcombine.high %v728, %v750
        %v2806 = vunpack.c.l.s4 1983009808
        %v2807 = vunpack.c.0.s8 %v2806
        %v2808 = vlaneseq
        %v2809 = vshrl.u32 %v2808, 7
        %v2810 = vsub.s32 %v2807, %v2809
        %v2811 = vrot.slane %v2803, %v2810
        %v2813 = vunpack.c.l.s4 1983009808
        %v2814 = vunpack.c.0.s8 %v2813
        %v2815 = vlaneseq
        %v2816 = vshrl.u32 %v2815, 7
        %v2817 = vsub.s32 %v2814, %v2816
        %v2818 = vrot.slane %v2804, %v2817
        %v2819 = vcombine.low %v761, %v783
        %v2820 = vcombine.high %v761, %v783
        %v2822 = vunpack.c.l.s4 1983009808
        %v2823 = vunpack.c.0.s8 %v2822
        %v2824 = vlaneseq
        %v2825 = vshrl.u32 %v2824, 7
        %v2826 = vsub.s32 %v2823, %v2825
        %v2827 = vrot.slane %v2819, %v2826
        %v2829 = vunpack.c.l.s4 1983009808
        %v2830 = vunpack.c.0.s8 %v2829
        %v2831 = vlaneseq
        %v2832 = vshrl.u32 %v2831, 7
        %v2833 = vsub.s32 %v2830, %v2832
        %v2834 = vrot.slane %v2820, %v2833
        %v2835 = vcombine.low %v772, %v794
        %v2836 = vcombine.high %v772, %v794
        %v2838 = vunpack.c.l.s4 1983009808
        %v2839 = vunpack.c.0.s8 %v2838
        %v2840 = vlaneseq
        %v2841 = vshrl.u32 %v2840, 7
        %v2842 = vsub.s32 %v2839, %v2841
        %v2843 = vrot.slane %v2835, %v2842
        %v2845 = vunpack.c.l.s4 1983009808
        %v2846 = vunpack.c.0.s8 %v2845
        %v2847 = vlaneseq
        %v2848 = vshrl.u32 %v2847, 7
        %v2849 = vsub.s32 %v2846, %v2848
        %v2850 = vrot.slane %v2836, %v2849
        %v2851 = vcombine.low %v2795, %v2811
        %v2852 = vcombine.high %v2795, %v2811
        %v2854 = vunpack.c.l.s4 1934713408
        %v2855 = vunpack.c.0.s8 %v2854
        %v2856 = vlaneseq
        %v2857 = vshrl.u32 %v2856, 7
        %v2858 = vsub.s32 %v2855, %v2857
        %v2859 = vrot.slane %v2851, %v2858
        %v2861 = vunpack.c.l.s4 1934713408
        %v2862 = vunpack.c.0.s8 %v2861
        %v2863 = vlaneseq
        %v2864 = vshrl.u32 %v2863, 7
        %v2865 = vsub.s32 %v2862, %v2864
        %v2866 = vrot.slane %v2852, %v2865
        %v2867 = vcombine.low %v2802, %v2818
        %v2868 = vcombine.high %v2802, %v2818
        %v2870 = vunpack.c.l.s4 1934713408
        %v2871 = vunpack.c.0.s8 %v2870
        %v2872 = vlaneseq
        %v2873 = vshrl.u32 %v2872, 7
        %v2874 = vsub.s32 %v2871, %v2873
        %v2875 = vrot.slane %v2867, %v2874
        %v2877 = vunpack.c.l.s4 1934713408
        %v2878 = vunpack.c.0.s8 %v2877
        %v2879 = vlaneseq
        %v2880 = vshrl.u32 %v2879, 7
        %v2881 = vsub.s32 %v2878, %v2880
        %v2882 = vrot.slane %v2868, %v2881
        %v2883 = vcombine.low %v2827, %v2843
        %v2884 = vcombine.high %v2827, %v2843
        %v2886 = vunpack.c.l.s4 1934713408
        %v2887 = vunpack.c.0.s8 %v2886
        %v2888 = vlaneseq
        %v2889 = vshrl.u32 %v2888, 7
        %v2890 = vsub.s32 %v2887, %v2889
        %v2891 = vrot.slane %v2883, %v2890
        %v2893 = vunpack.c.l.s4 1934713408
        %v2894 = vunpack.c.0.s8 %v2893
        %v2895 = vlaneseq
        %v2896 = vshrl.u32 %v2895, 7
        %v2897 = vsub.s32 %v2894, %v2896
        %v2898 = vrot.slane %v2884, %v2897
        %v2899 = vcombine.low %v2834, %v2850
        %v2900 = vcombine.high %v2834, %v2850
        %v2902 = vunpack.c.l.s4 1934713408
        %v2903 = vunpack.c.0.s8 %v2902
        %v2904 = vlaneseq
        %v2905 = vshrl.u32 %v2904, 7
        %v2906 = vsub.s32 %v2903, %v2905
        %v2907 = vrot.slane %v2899, %v2906
        %v2909 = vunpack.c.l.s4 1934713408
        %v2910 = vunpack.c.0.s8 %v2909
        %v2911 = vlaneseq
        %v2912 = vshrl.u32 %v2911, 7
        %v2913 = vsub.s32 %v2910, %v2912
        %v2914 = vrot.slane %v2900, %v2913
        %v2915 = vcombine.low %v2859, %v2891
        %v2916 = vcombine.high %v2859, %v2891
        %v2917 = vcombine.low %v2866, %v2898
        %v2918 = vcombine.high %v2866, %v2898
        %v2919 = vcombine.low %v2875, %v2907
        %v2920 = vcombine.high %v2875, %v2907
        %v2921 = vcombine.low %v2882, %v2914
        %v2922 = vcombine.high %v2882, %v2914
        %v2923 = vcombine.low %v805, %v827
        %v2924 = vcombine.high %v805, %v827
        %v2926 = vunpack.c.l.s4 1983009808
        %v2927 = vunpack.c.0.s8 %v2926
        %v2928 = vlaneseq
        %v2929 = vshrl.u32 %v2928, 7
        %v2930 = vsub.s32 %v2927, %v2929
        %v2931 = vrot.slane %v2923, %v2930
        %v2933 = vunpack.c.l.s4 1983009808
        %v2934 = vunpack.c.0.s8 %v2933
        %v2935 = vlaneseq
        %v2936 = vshrl.u32 %v2935, 7
        %v2937 = vsub.s32 %v2934, %v2936
        %v2938 = vrot.slane %v2924, %v2937
        %v2939 = vcombine.low %v816, %v838
        %v2940 = vcombine.high %v816, %v838
        %v2942 = vunpack.c.l.s4 1983009808
        %v2943 = vunpack.c.0.s8 %v2942
        %v2944 = vlaneseq
        %v2945 = vshrl.u32 %v2944, 7
        %v2946 = vsub.s32 %v2943, %v2945
        %v2947 = vrot.slane %v2939, %v2946
        %v2949 = vunpack.c.l.s4 1983009808
        %v2950 = vunpack.c.0.s8 %v2949
        %v2951 = vlaneseq
        %v2952 = vshrl.u32 %v2951, 7
        %v2953 = vsub.s32 %v2950, %v2952
        %v2954 = vrot.slane %v2940, %v2953
        %v2955 = vcombine.low %v849, %v871
        %v2956 = vcombine.high %v849, %v871
        %v2958 = vunpack.c.l.s4 1983009808
        %v2959 = vunpack.c.0.s8 %v2958
        %v2960 = vlaneseq
        %v2961 = vshrl.u32 %v2960, 7
        %v2962 = vsub.s32 %v2959, %v2961
        %v2963 = vrot.slane %v2955, %v2962
        %v2965 = vunpack.c.l.s4 1983009808
        %v2966 = vunpack.c.0.s8 %v2965
        %v2967 = vlaneseq
        %v2968 = vshrl.u32 %v2967, 7
        %v2969 = vsub.s32 %v2966, %v2968
        %v2970 = vrot.slane %v2956, %v2969
        %v2971 = vcombine.low %v860, %v882
        %v2972 = vcombine.high %v860, %v882
        %v2974 = vunpack.c.l.s4 1983009808
        %v2975 = vunpack.c.0.s8 %v2974
        %v2976 = vlaneseq
        %v2977 = vshrl.u32 %v2976, 7
        %v2978 = vsub.s32 %v2975, %v2977
        %v2979 = vrot.slane %v2971, %v2978
        %v2981 = vunpack.c.l.s4 1983009808
        %v2982 = vunpack.c.0.s8 %v2981
        %v2983 = vlaneseq
        %v2984 = vshrl.u32 %v2983, 7
        %v2985 = vsub.s32 %v2982, %v2984
        %v2986 = vrot.slane %v2972, %v2985
        %v2987 = vcombine.low %v2931, %v2947
        %v2988 = vcombine.high %v2931, %v2947
        %v2990 = vunpack.c.l.s4 1934713408
        %v2991 = vunpack.c.0.s8 %v2990
        %v2992 = vlaneseq
        %v2993 = vshrl.u32 %v2992, 7
        %v2994 = vsub.s32 %v2991, %v2993
        %v2995 = vrot.slane %v2987, %v2994
        %v2997 = vunpack.c.l.s4 1934713408
        %v2998 = vunpack.c.0.s8 %v2997
        %v2999 = vlaneseq
        %v3000 = vshrl.u32 %v2999, 7
        %v3001 = vsub.s32 %v2998, %v3000
        %v3002 = vrot.slane %v2988, %v3001
        %v3003 = vcombine.low %v2938, %v2954
        %v3004 = vcombine.high %v2938, %v2954
        %v3006 = vunpack.c.l.s4 1934713408
        %v3007 = vunpack.c.0.s8 %v3006
        %v3008 = vlaneseq
        %v3009 = vshrl.u32 %v3008, 7
        %v3010 = vsub.s32 %v3007, %v3009
        %v3011 = vrot.slane %v3003, %v3010
        %v3013 = vunpack.c.l.s4 1934713408
        %v3014 = vunpack.c.0.s8 %v3013
        %v3015 = vlaneseq
        %v3016 = vshrl.u32 %v3015, 7
        %v3017 = vsub.s32 %v3014, %v3016
        %v3018 = vrot.slane %v3004, %v3017
        %v3019 = vcombine.low %v2963, %v2979
        %v3020 = vcombine.high %v2963, %v2979
        %v3022 = vunpack.c.l.s4 1934713408
        %v3023 = vunpack.c.0.s8 %v3022
        %v3024 = vlaneseq
        %v3025 = vshrl.u32 %v3024, 7
        %v3026 = vsub.s32 %v3023, %v3025
        %v3027 = vrot.slane %v3019, %v3026
        %v3029 = vunpack.c.l.s4 1934713408
        %v3030 = vunpack.c.0.s8 %v3029
        %v3031 = vlaneseq
        %v3032 = vshrl.u32 %v3031, 7
        %v3033 = vsub.s32 %v3030, %v3032
        %v3034 = vrot.slane %v3020, %v3033
        %v3035 = vcombine.low %v2970, %v2986
        %v3036 = vcombine.high %v2970, %v2986
        %v3038 = vunpack.c.l.s4 1934713408
        %v3039 = vunpack.c.0.s8 %v3038
        %v3040 = vlaneseq
        %v3041 = vshrl.u32 %v3040, 7
        %v3042 = vsub.s32 %v3039, %v3041
        %v3043 = vrot.slane %v3035, %v3042
        %v3045 = vunpack.c.l.s4 1934713408
        %v3046 = vunpack.c.0.s8 %v3045
        %v3047 = vlaneseq
        %v3048 = vshrl.u32 %v3047, 7
        %v3049 = vsub.s32 %v3046, %v3048
        %v3050 = vrot.slane %v3036, %v3049
        %v3051 = vcombine.low %v2995, %v3027
        %v3052 = vcombine.high %v2995, %v3027
        %v3053 = vcombine.low %v3002, %v3034
        %v3054 = vcombine.high %v3002, %v3034
        %v3055 = vcombine.low %v3011, %v3043
        %v3056 = vcombine.high %v3011, %v3043
        %v3057 = vcombine.low %v3018, %v3050
        %v3058 = vcombine.high %v3018, %v3050
        %3067 = vrot.lane.b32.xlu0 %v1012, 2
        %v3068 = vpop.permute.xlu0 %3067
        %3069 = vrot.lane.b32.xlu0 %v1148, 2
        %v3070 = vpop.permute.xlu0 %3069
        %3071 = vrot.lane.b32.xlu0 %v1556, 2
        %v3072 = vpop.permute.xlu0 %3071
        %3073 = vrot.lane.b32.xlu0 %v1692, 2
        %v3074 = vpop.permute.xlu0 %3073
        %3075 = vrot.lane.b32.xlu0 %v2100, 2
        %v3076 = vpop.permute.xlu0 %3075
        %3077 = vrot.lane.b32.xlu0 %v2236, 2
        %v3078 = vpop.permute.xlu0 %3077
        %3079 = vrot.lane.b32.xlu0 %v2644, 2
        %v3080 = vpop.permute.xlu0 %3079
        %3081 = vrot.lane.b32.xlu0 %v2780, 2
        %v3082 = vpop.permute.xlu0 %3081
        %3099 = vrot.lane.b32.xlu0 %v1013, 4
        %v3100 = vpop.permute.xlu0 %3099
        %3101 = vrot.lane.b32.xlu0 %v1149, 4
        %v3102 = vpop.permute.xlu0 %3101
        %3103 = vrot.lane.b32.xlu0 %v1557, 4
        %v3104 = vpop.permute.xlu0 %3103
        %3105 = vrot.lane.b32.xlu0 %v1693, 4
        %v3106 = vpop.permute.xlu0 %3105
        %3107 = vrot.lane.b32.xlu0 %v2101, 4
        %v3108 = vpop.permute.xlu0 %3107
        %3109 = vrot.lane.b32.xlu0 %v2237, 4
        %v3110 = vpop.permute.xlu0 %3109
        %3111 = vrot.lane.b32.xlu0 %v2645, 4
        %v3112 = vpop.permute.xlu0 %3111
        %3113 = vrot.lane.b32.xlu0 %v2781, 4
        %v3114 = vpop.permute.xlu0 %3113
        %3131 = vrot.lane.b32.xlu0 %v1014, 6
        %v3132 = vpop.permute.xlu0 %3131
        %3133 = vrot.lane.b32.xlu0 %v1150, 6
        %v3134 = vpop.permute.xlu0 %3133
        %3135 = vrot.lane.b32.xlu0 %v1558, 6
        %v3136 = vpop.permute.xlu0 %3135
        %3137 = vrot.lane.b32.xlu0 %v1694, 6
        %v3138 = vpop.permute.xlu0 %3137
        %3139 = vrot.lane.b32.xlu0 %v2102, 6
        %v3140 = vpop.permute.xlu0 %3139
        %3141 = vrot.lane.b32.xlu0 %v2238, 6
        %v3142 = vpop.permute.xlu0 %3141
        %3143 = vrot.lane.b32.xlu0 %v2646, 6
        %v3144 = vpop.permute.xlu0 %3143
        %3145 = vrot.lane.b32.xlu0 %v2782, 6
        %v3146 = vpop.permute.xlu0 %3145
        %3163 = vrot.lane.b32.xlu0 %v1015, 8
        %v3164 = vpop.permute.xlu0 %3163
        %3165 = vrot.lane.b32.xlu0 %v1151, 8
        %v3166 = vpop.permute.xlu0 %3165
        %3167 = vrot.lane.b32.xlu0 %v1559, 8
        %v3168 = vpop.permute.xlu0 %3167
        %3169 = vrot.lane.b32.xlu0 %v1695, 8
        %v3170 = vpop.permute.xlu0 %3169
        %3171 = vrot.lane.b32.xlu0 %v2103, 8
        %v3172 = vpop.permute.xlu0 %3171
        %3173 = vrot.lane.b32.xlu0 %v2239, 8
        %v3174 = vpop.permute.xlu0 %3173
        %3175 = vrot.lane.b32.xlu0 %v2647, 8
        %v3176 = vpop.permute.xlu0 %3175
        %3177 = vrot.lane.b32.xlu0 %v2783, 8
        %v3178 = vpop.permute.xlu0 %3177
        %3195 = vrot.lane.b32.xlu0 %v1016, 10
        %v3196 = vpop.permute.xlu0 %3195
        %3197 = vrot.lane.b32.xlu0 %v1152, 10
        %v3198 = vpop.permute.xlu0 %3197
        %3199 = vrot.lane.b32.xlu0 %v1560, 10
        %v3200 = vpop.permute.xlu0 %3199
        %3201 = vrot.lane.b32.xlu0 %v1696, 10
        %v3202 = vpop.permute.xlu0 %3201
        %3203 = vrot.lane.b32.xlu0 %v2104, 10
        %v3204 = vpop.permute.xlu0 %3203
        %3205 = vrot.lane.b32.xlu0 %v2240, 10
        %v3206 = vpop.permute.xlu0 %3205
        %3207 = vrot.lane.b32.xlu0 %v2648, 10
        %v3208 = vpop.permute.xlu0 %3207
        %3209 = vrot.lane.b32.xlu0 %v2784, 10
        %v3210 = vpop.permute.xlu0 %3209
        %3227 = vrot.lane.b32.xlu0 %v1017, 12
        %v3228 = vpop.permute.xlu0 %3227
        %3229 = vrot.lane.b32.xlu0 %v1153, 12
        %v3230 = vpop.permute.xlu0 %3229
        %3231 = vrot.lane.b32.xlu0 %v1561, 12
        %v3232 = vpop.permute.xlu0 %3231
        %3233 = vrot.lane.b32.xlu0 %v1697, 12
        %v3234 = vpop.permute.xlu0 %3233
        %3235 = vrot.lane.b32.xlu0 %v2105, 12
        %v3236 = vpop.permute.xlu0 %3235
        %3237 = vrot.lane.b32.xlu0 %v2241, 12
        %v3238 = vpop.permute.xlu0 %3237
        %3239 = vrot.lane.b32.xlu0 %v2649, 12
        %v3240 = vpop.permute.xlu0 %3239
        %3241 = vrot.lane.b32.xlu0 %v2785, 12
        %v3242 = vpop.permute.xlu0 %3241
        %3259 = vrot.lane.b32.xlu0 %v1018, 14
        %v3260 = vpop.permute.xlu0 %3259
        %3261 = vrot.lane.b32.xlu0 %v1154, 14
        %v3262 = vpop.permute.xlu0 %3261
        %3263 = vrot.lane.b32.xlu0 %v1562, 14
        %v3264 = vpop.permute.xlu0 %3263
        %3265 = vrot.lane.b32.xlu0 %v1698, 14
        %v3266 = vpop.permute.xlu0 %3265
        %3267 = vrot.lane.b32.xlu0 %v2106, 14
        %v3268 = vpop.permute.xlu0 %3267
        %3269 = vrot.lane.b32.xlu0 %v2242, 14
        %v3270 = vpop.permute.xlu0 %3269
        %3271 = vrot.lane.b32.xlu0 %v2650, 14
        %v3272 = vpop.permute.xlu0 %3271
        %3273 = vrot.lane.b32.xlu0 %v2786, 14
        %v3274 = vpop.permute.xlu0 %3273
        %3291 = vrot.lane.b32.xlu0 %v1283, 16
        %v3292 = vpop.permute.xlu0 %3291
        %3293 = vrot.lane.b32.xlu0 %v1419, 16
        %v3294 = vpop.permute.xlu0 %3293
        %3295 = vrot.lane.b32.xlu0 %v1827, 16
        %v3296 = vpop.permute.xlu0 %3295
        %3297 = vrot.lane.b32.xlu0 %v1963, 16
        %v3298 = vpop.permute.xlu0 %3297
        %3299 = vrot.lane.b32.xlu0 %v2371, 16
        %v3300 = vpop.permute.xlu0 %3299
        %3301 = vrot.lane.b32.xlu0 %v2507, 16
        %v3302 = vpop.permute.xlu0 %3301
        %3303 = vrot.lane.b32.xlu0 %v2915, 16
        %v3304 = vpop.permute.xlu0 %3303
        %3305 = vrot.lane.b32.xlu0 %v3051, 16
        %v3306 = vpop.permute.xlu0 %3305
        %3323 = vrot.lane.b32.xlu0 %v1284, 18
        %v3324 = vpop.permute.xlu0 %3323
        %3325 = vrot.lane.b32.xlu0 %v1420, 18
        %v3326 = vpop.permute.xlu0 %3325
        %3327 = vrot.lane.b32.xlu0 %v1828, 18
        %v3328 = vpop.permute.xlu0 %3327
        %3329 = vrot.lane.b32.xlu0 %v1964, 18
        %v3330 = vpop.permute.xlu0 %3329
        %3331 = vrot.lane.b32.xlu0 %v2372, 18
        %v3332 = vpop.permute.xlu0 %3331
        %3333 = vrot.lane.b32.xlu0 %v2508, 18
        %v3334 = vpop.permute.xlu0 %3333
        %3335 = vrot.lane.b32.xlu0 %v2916, 18
        %v3336 = vpop.permute.xlu0 %3335
        %3337 = vrot.lane.b32.xlu0 %v3052, 18
        %v3338 = vpop.permute.xlu0 %3337
        %3355 = vrot.lane.b32.xlu0 %v1285, 20
        %v3356 = vpop.permute.xlu0 %3355
        %3357 = vrot.lane.b32.xlu0 %v1421, 20
        %v3358 = vpop.permute.xlu0 %3357
        %3359 = vrot.lane.b32.xlu0 %v1829, 20
        %v3360 = vpop.permute.xlu0 %3359
        %3361 = vrot.lane.b32.xlu0 %v1965, 20
        %v3362 = vpop.permute.xlu0 %3361
        %3363 = vrot.lane.b32.xlu0 %v2373, 20
        %v3364 = vpop.permute.xlu0 %3363
        %3365 = vrot.lane.b32.xlu0 %v2509, 20
        %v3366 = vpop.permute.xlu0 %3365
        %3367 = vrot.lane.b32.xlu0 %v2917, 20
        %v3368 = vpop.permute.xlu0 %3367
        %3369 = vrot.lane.b32.xlu0 %v3053, 20
        %v3370 = vpop.permute.xlu0 %3369
        %3387 = vrot.lane.b32.xlu0 %v1286, 22
        %v3388 = vpop.permute.xlu0 %3387
        %3389 = vrot.lane.b32.xlu0 %v1422, 22
        %v3390 = vpop.permute.xlu0 %3389
        %3391 = vrot.lane.b32.xlu0 %v1830, 22
        %v3392 = vpop.permute.xlu0 %3391
        %3393 = vrot.lane.b32.xlu0 %v1966, 22
        %v3394 = vpop.permute.xlu0 %3393
        %3395 = vrot.lane.b32.xlu0 %v2374, 22
        %v3396 = vpop.permute.xlu0 %3395
        %3397 = vrot.lane.b32.xlu0 %v2510, 22
        %v3398 = vpop.permute.xlu0 %3397
        %3399 = vrot.lane.b32.xlu0 %v2918, 22
        %v3400 = vpop.permute.xlu0 %3399
        %3401 = vrot.lane.b32.xlu0 %v3054, 22
        %v3402 = vpop.permute.xlu0 %3401
        %3419 = vrot.lane.b32.xlu0 %v1287, 24
        %v3420 = vpop.permute.xlu0 %3419
        %3421 = vrot.lane.b32.xlu0 %v1423, 24
        %v3422 = vpop.permute.xlu0 %3421
        %3423 = vrot.lane.b32.xlu0 %v1831, 24
        %v3424 = vpop.permute.xlu0 %3423
        %3425 = vrot.lane.b32.xlu0 %v1967, 24
        %v3426 = vpop.permute.xlu0 %3425
        %3427 = vrot.lane.b32.xlu0 %v2375, 24
        %v3428 = vpop.permute.xlu0 %3427
        %3429 = vrot.lane.b32.xlu0 %v2511, 24
        %v3430 = vpop.permute.xlu0 %3429
        %3431 = vrot.lane.b32.xlu0 %v2919, 24
        %v3432 = vpop.permute.xlu0 %3431
        %3433 = vrot.lane.b32.xlu0 %v3055, 24
        %v3434 = vpop.permute.xlu0 %3433
        %3451 = vrot.lane.b32.xlu0 %v1288, 26
        %v3452 = vpop.permute.xlu0 %3451
        %3453 = vrot.lane.b32.xlu0 %v1424, 26
        %v3454 = vpop.permute.xlu0 %3453
        %3455 = vrot.lane.b32.xlu0 %v1832, 26
        %v3456 = vpop.permute.xlu0 %3455
        %3457 = vrot.lane.b32.xlu0 %v1968, 26
        %v3458 = vpop.permute.xlu0 %3457
        %3459 = vrot.lane.b32.xlu0 %v2376, 26
        %v3460 = vpop.permute.xlu0 %3459
        %3461 = vrot.lane.b32.xlu0 %v2512, 26
        %v3462 = vpop.permute.xlu0 %3461
        %3463 = vrot.lane.b32.xlu0 %v2920, 26
        %v3464 = vpop.permute.xlu0 %3463
        %3465 = vrot.lane.b32.xlu0 %v3056, 26
        %v3466 = vpop.permute.xlu0 %3465
        %3483 = vrot.lane.b32.xlu0 %v1289, 28
        %v3484 = vpop.permute.xlu0 %3483
        %3485 = vrot.lane.b32.xlu0 %v1425, 28
        %v3486 = vpop.permute.xlu0 %3485
        %3487 = vrot.lane.b32.xlu0 %v1833, 28
        %v3488 = vpop.permute.xlu0 %3487
        %3489 = vrot.lane.b32.xlu0 %v1969, 28
        %v3490 = vpop.permute.xlu0 %3489
        %3491 = vrot.lane.b32.xlu0 %v2377, 28
        %v3492 = vpop.permute.xlu0 %3491
        %3493 = vrot.lane.b32.xlu0 %v2513, 28
        %v3494 = vpop.permute.xlu0 %3493
        %3495 = vrot.lane.b32.xlu0 %v2921, 28
        %v3496 = vpop.permute.xlu0 %3495
        %3497 = vrot.lane.b32.xlu0 %v3057, 28
        %v3498 = vpop.permute.xlu0 %3497
        %3515 = vrot.lane.b32.xlu0 %v1290, 30
        %v3516 = vpop.permute.xlu0 %3515
        %3517 = vrot.lane.b32.xlu0 %v1426, 30
        %v3518 = vpop.permute.xlu0 %3517
        %3519 = vrot.lane.b32.xlu0 %v1834, 30
        %v3520 = vpop.permute.xlu0 %3519
        %3521 = vrot.lane.b32.xlu0 %v1970, 30
        %v3522 = vpop.permute.xlu0 %3521
        %3523 = vrot.lane.b32.xlu0 %v2378, 30
        %v3524 = vpop.permute.xlu0 %3523
        %3525 = vrot.lane.b32.xlu0 %v2514, 30
        %v3526 = vpop.permute.xlu0 %3525
        %3527 = vrot.lane.b32.xlu0 %v2922, 30
        %v3528 = vpop.permute.xlu0 %3527
        %3529 = vrot.lane.b32.xlu0 %v3058, 30
        %v3530 = vpop.permute.xlu0 %3529
        %vm3539 = vcmask 15360
        %v3540 = vsel %vm3539, %v1011, %v3068
        %v3541 = vsel %vm3539, %v1147, %v3070
        %v3542 = vsel %vm3539, %v1555, %v3072
        %v3543 = vsel %vm3539, %v1691, %v3074
        %v3544 = vsel %vm3539, %v2099, %v3076
        %v3545 = vsel %vm3539, %v2235, %v3078
        %v3546 = vsel %vm3539, %v2643, %v3080
        %v3547 = vsel %vm3539, %v2779, %v3082
        %vm3548 = vcmask 31744
        %v3549 = vsel %vm3548, %v3540, %v3100
        %v3550 = vsel %vm3548, %v3541, %v3102
        %v3551 = vsel %vm3548, %v3542, %v3104
        %v3552 = vsel %vm3548, %v3543, %v3106
        %v3553 = vsel %vm3548, %v3544, %v3108
        %v3554 = vsel %vm3548, %v3545, %v3110
        %v3555 = vsel %vm3548, %v3546, %v3112
        %v3556 = vsel %vm3548, %v3547, %v3114
        %vm3557 = vcmask 48128
        %v3558 = vsel %vm3557, %v3549, %v3132
        %v3559 = vsel %vm3557, %v3550, %v3134
        %v3560 = vsel %vm3557, %v3551, %v3136
        %v3561 = vsel %vm3557, %v3552, %v3138
        %v3562 = vsel %vm3557, %v3553, %v3140
        %v3563 = vsel %vm3557, %v3554, %v3142
        %v3564 = vsel %vm3557, %v3555, %v3144
        %v3565 = vsel %vm3557, %v3556, %v3146
        %vm3566 = vcmask 64512
        %v3567 = vsel %vm3566, %v3558, %v3164
        %v3568 = vsel %vm3566, %v3559, %v3166
        %v3569 = vsel %vm3566, %v3560, %v3168
        %v3570 = vsel %vm3566, %v3561, %v3170
        %v3571 = vsel %vm3566, %v3562, %v3172
        %v3572 = vsel %vm3566, %v3563, %v3174
        %v3573 = vsel %vm3566, %v3564, %v3176
        %v3574 = vsel %vm3566, %v3565, %v3178
        %vm3575 = vcmask 80896
        %v3576 = vsel %vm3575, %v3567, %v3196
        %v3577 = vsel %vm3575, %v3568, %v3198
        %v3578 = vsel %vm3575, %v3569, %v3200
        %v3579 = vsel %vm3575, %v3570, %v3202
        %v3580 = vsel %vm3575, %v3571, %v3204
        %v3581 = vsel %vm3575, %v3572, %v3206
        %v3582 = vsel %vm3575, %v3573, %v3208
        %v3583 = vsel %vm3575, %v3574, %v3210
        %vm3584 = vcmask 97280
        %v3585 = vsel %vm3584, %v3576, %v3228
        %v3586 = vsel %vm3584, %v3577, %v3230
        %v3587 = vsel %vm3584, %v3578, %v3232
        %v3588 = vsel %vm3584, %v3579, %v3234
        %v3589 = vsel %vm3584, %v3580, %v3236
        %v3590 = vsel %vm3584, %v3581, %v3238
        %v3591 = vsel %vm3584, %v3582, %v3240
        %v3592 = vsel %vm3584, %v3583, %v3242
        %vm3593 = vcmask 113664
        %v3594 = vsel %vm3593, %v3585, %v3260
        %v3595 = vsel %vm3593, %v3586, %v3262
        %v3596 = vsel %vm3593, %v3587, %v3264
        %v3597 = vsel %vm3593, %v3588, %v3266
        %v3598 = vsel %vm3593, %v3589, %v3268
        %v3599 = vsel %vm3593, %v3590, %v3270
        %v3600 = vsel %vm3593, %v3591, %v3272
        %v3601 = vsel %vm3593, %v3592, %v3274
        %vm3602 = vcmask 130048
        %v3603 = vsel %vm3602, %v3594, %v3292
        %v3604 = vsel %vm3602, %v3595, %v3294
        %v3605 = vsel %vm3602, %v3596, %v3296
        %v3606 = vsel %vm3602, %v3597, %v3298
        %v3607 = vsel %vm3602, %v3598, %v3300
        %v3608 = vsel %vm3602, %v3599, %v3302
        %v3609 = vsel %vm3602, %v3600, %v3304
        %v3610 = vsel %vm3602, %v3601, %v3306
        %vm3611 = vcmask 146432
        %v3612 = vsel %vm3611, %v3603, %v3324
        %v3613 = vsel %vm3611, %v3604, %v3326
        %v3614 = vsel %vm3611, %v3605, %v3328
        %v3615 = vsel %vm3611, %v3606, %v3330
        %v3616 = vsel %vm3611, %v3607, %v3332
        %v3617 = vsel %vm3611, %v3608, %v3334
        %v3618 = vsel %vm3611, %v3609, %v3336
        %v3619 = vsel %vm3611, %v3610, %v3338
        %vm3620 = vcmask 162816
        %v3621 = vsel %vm3620, %v3612, %v3356
        %v3622 = vsel %vm3620, %v3613, %v3358
        %v3623 = vsel %vm3620, %v3614, %v3360
        %v3624 = vsel %vm3620, %v3615, %v3362
        %v3625 = vsel %vm3620, %v3616, %v3364
        %v3626 = vsel %vm3620, %v3617, %v3366
        %v3627 = vsel %vm3620, %v3618, %v3368
        %v3628 = vsel %vm3620, %v3619, %v3370
        %vm3629 = vcmask 179200
        %v3630 = vsel %vm3629, %v3621, %v3388
        %v3631 = vsel %vm3629, %v3622, %v3390
        %v3632 = vsel %vm3629, %v3623, %v3392
        %v3633 = vsel %vm3629, %v3624, %v3394
        %v3634 = vsel %vm3629, %v3625, %v3396
        %v3635 = vsel %vm3629, %v3626, %v3398
        %v3636 = vsel %vm3629, %v3627, %v3400
        %v3637 = vsel %vm3629, %v3628, %v3402
        %vm3638 = vcmask 195584
        %v3639 = vsel %vm3638, %v3630, %v3420
        %v3640 = vsel %vm3638, %v3631, %v3422
        %v3641 = vsel %vm3638, %v3632, %v3424
        %v3642 = vsel %vm3638, %v3633, %v3426
        %v3643 = vsel %vm3638, %v3634, %v3428
        %v3644 = vsel %vm3638, %v3635, %v3430
        %v3645 = vsel %vm3638, %v3636, %v3432
        %v3646 = vsel %vm3638, %v3637, %v3434
        %vm3647 = vcmask 211968
        %v3648 = vsel %vm3647, %v3639, %v3452
        %v3649 = vsel %vm3647, %v3640, %v3454
        %v3650 = vsel %vm3647, %v3641, %v3456
        %v3651 = vsel %vm3647, %v3642, %v3458
        %v3652 = vsel %vm3647, %v3643, %v3460
        %v3653 = vsel %vm3647, %v3644, %v3462
        %v3654 = vsel %vm3647, %v3645, %v3464
        %v3655 = vsel %vm3647, %v3646, %v3466
        %vm3656 = vcmask 228352
        %v3657 = vsel %vm3656, %v3648, %v3484
        %v3658 = vsel %vm3656, %v3649, %v3486
        %v3659 = vsel %vm3656, %v3650, %v3488
        %v3660 = vsel %vm3656, %v3651, %v3490
        %v3661 = vsel %vm3656, %v3652, %v3492
        %v3662 = vsel %vm3656, %v3653, %v3494
        %v3663 = vsel %vm3656, %v3654, %v3496
        %v3664 = vsel %vm3656, %v3655, %v3498
        %vm3665 = vcmask 244736
        %v3666 = vsel %vm3665, %v3657, %v3516
        %v3667 = vsel %vm3665, %v3658, %v3518
        %v3668 = vsel %vm3665, %v3659, %v3520
        %v3669 = vsel %vm3665, %v3660, %v3522
        %v3670 = vsel %vm3665, %v3661, %v3524
        %v3671 = vsel %vm3665, %v3662, %v3526
        %v3672 = vsel %vm3665, %v3663, %v3528
        %v3673 = vsel %vm3665, %v3664, %v3530
        %3682 = vrot.lane.b32.xlu0 %v3666, 32
        %v3683 = vpop.permute.xlu0 %3682
        %3684 = vrot.lane.b32.xlu0 %v3667, 32
        %v3685 = vpop.permute.xlu0 %3684
        %3686 = vrot.lane.b32.xlu0 %v3668, 32
        %v3687 = vpop.permute.xlu0 %3686
        %3688 = vrot.lane.b32.xlu0 %v3669, 32
        %v3689 = vpop.permute.xlu0 %3688
        %3690 = vrot.lane.b32.xlu0 %v3670, 32
        %v3691 = vpop.permute.xlu0 %3690
        %3692 = vrot.lane.b32.xlu0 %v3671, 32
        %v3693 = vpop.permute.xlu0 %3692
        %3694 = vrot.lane.b32.xlu0 %v3672, 32
        %v3695 = vpop.permute.xlu0 %3694
        %3696 = vrot.lane.b32.xlu0 %v3673, 32
        %v3697 = vpop.permute.xlu0 %3696
        %vm3706 = vcmask 261120
        %v3707 = vsel %vm3706, %v3666, %v3683
        %v3708 = vsel %vm3706, %v3667, %v3685
        %v3709 = vsel %vm3706, %v3668, %v3687
        %v3710 = vsel %vm3706, %v3669, %v3689
        %v3711 = vsel %vm3706, %v3670, %v3691
        %v3712 = vsel %vm3706, %v3671, %v3693
        %v3713 = vsel %vm3706, %v3672, %v3695
        %v3714 = vsel %vm3706, %v3673, %v3697
        %vm3715 = vcmask 523264
        %3716 = vst.msk [vmem:[%s166] sm:$0xff] %vm3715, %v3707
        %3717 = vst.msk [vmem:[%s166 + $0x8] sm:$0xff] %vm3715, %v3708
        %3718 = vst.msk [vmem:[%s166 + $0x10] sm:$0xff] %vm3715, %v3709
        %3719 = vst.msk [vmem:[%s166 + $0x18] sm:$0xff] %vm3715, %v3710
        %3720 = vst.msk [vmem:[%s166 + $0x20] sm:$0xff] %vm3715, %v3711
        %3721 = vst.msk [vmem:[%s166 + $0x28] sm:$0xff] %vm3715, %v3712
        %3722 = vst.msk [vmem:[%s166 + $0x30] sm:$0xff] %vm3715, %v3713
        %3723 = vst.msk [vmem:[%s166 + $0x38] sm:$0xff] %vm3715, %v3714
        %s3724 = sand.u32 %s79, 1
        %s3725 = scalar_lea.sflag [#allocation4], %s3724
        %s3726 = sand.u32 %s79, 1
        %s3727 = smul.addr %s3726, 64
        %s3728 = scalar_lea.vmem [#allocation5], %s3727
        // Predicated region
        $region29: #{tpu_custom_call.1} parent=23 // pred_check
          %p3729 = pneg %p89
        $region30: #{tpu_custom_call.1} parent=23 // pred_check_branch
          %3731 = sbr.rel (%p3729) target = $region32
        $region31: #{tpu_custom_call.1} parent=23 // pred_region
          %s3732 = smul.u32 4, %s24
          %s3733 = smul.u32 2, %s25
          %s3735 = ssub.s32 1024, 1024
          %3736 = vsyncadd %s3725, %s3735
          %s3737 = smul.addr %s3732, 2
          %s3738 = sadd.s32 %s3733, %s3737
          %s3739 = smul.addr %s23, 8
          %s3740 = sadd.s32 %s3738, %s3739
          %s3741 = smul.addr %s3740, 128
          %s3742 = scalar_lea.hbm %s1, %s3741
          %s3743 = sshll.u32 %s3728, 4
          %s3744 = int_to_ptr.vmem [resolvable:$true] %s3743
          %3749 = dma.vmem_to_hbm [thread:$0]  %s3744, 1024, %s3742, %s3725, 128, 128, 8
        $region32: #{tpu_custom_call.1} parent=23 // pred_fallthru
          _
      $region24: #{tpu_custom_call.1} parent=5 // pred_fallthru
        _
      %p3750 = scmp.le.s32.totalorder 2, %s13
      // Predicated region
      $region33: #{tpu_custom_call.1} parent=5 // pred_check
        %p3751 = pneg %p3750
      $region34: #{tpu_custom_call.1} parent=5 // pred_check_branch
        %3753 = sbr.rel (%p3751) target = $region36
      $region35: #{tpu_custom_call.1} parent=5 // pred_region
        %s3754 = ssub.s32 %s13, 2
        // Predicated region
        $region37: #{tpu_custom_call.1} parent=35 // pred_check
          %p3755 = pneg %p95
        $region38: #{tpu_custom_call.1} parent=35 // pred_check_branch
          %3757 = sbr.rel (%p3755) target = $region40
        $region39: #{tpu_custom_call.1} parent=35 // pred_region
          %s3758 = sand.u32 %s80, 1
          %s3759 = scalar_lea.sflag [#allocation4], %s3758
          %s3760 = sand.u32 %s80, 1
          %s3761 = smul.addr %s3760, 64
          %s3762 = scalar_lea.vmem [#allocation5], %s3761
          %3763 = dma.done %s3759, 1024
        $region40: #{tpu_custom_call.1} parent=35 // pred_fallthru
          _
      $region36: #{tpu_custom_call.1} parent=5 // pred_fallthru
        _
    $region6: #{tpu_custom_call.1} parent=1 // loop_footer
      %s17 = sadd.s32 1, %s13
    $region7: #{tpu_custom_call.1} parent=1 // loop_footer_branch
      %12 = sbr.rel target = $region3
    $region8: #{tpu_custom_call.1} parent=1 // loop_exit
      _
    %3764 = vsyncpa [#allocation3], 1
    %s3765 = scalar_lea.sflag [#allocation3], 1
    %3766 = vsyncpa %s3765, 1
    %3767 = vsyncpa [#allocation4], 1
    %s3768 = scalar_lea.sflag [#allocation4], 1
    %3769 = vsyncpa %s3768, 1

</llo_original>
